<compile_context>
chip_gen: v6e
topology: v6e:2x2x1
jax: 0.10.0
libtpu: 0.0.40
codegen_flags: <defaults>
</compile_context>

<pallas_src>
import functools

import jax
import jax.numpy as jnp
from jax import lax
from jax.experimental import pallas as pl
from jax.experimental.pallas import tpu as pltpu

VMEM_SPEC = pl.BlockSpec(memory_space=pltpu.MemorySpace.VMEM)


def _row_tile(rows):
    """Largest convenient row tile that divides `rows` (keeps >=2 grid steps)."""
    for t in (256, 128, 64, 32, 16, 8):
        if rows % t == 0 and rows // t >= 2:
            return t
    return rows


# -----------------------------------------------------------------------------
# Kernel 1: fused embedding-bag for emb1 and emb2.
#   embedded_k[r] = sum_f mask[r, f] * emb_k[inputs[r, f]]
# The multi-hot row block is built in vregs (iota compare) and multiplied with
# the fused (V+1, 2H) table — no dense multi_hot in HBM.
# -----------------------------------------------------------------------------
def embed_kernel(idx_ref, msk_ref, tab_ref, o1_ref, o2_ref):
    idx = idx_ref[...]                                   # (TM, F) int32
    msk = msk_ref[...]                                   # (TM, F) f32
    tm, feat = idx.shape
    v1 = tab_ref.shape[0]
    hidden = o1_ref.shape[1]

    vids = lax.broadcasted_iota(jnp.int32, (tm, v1), 1)
    mh = jnp.zeros((tm, v1), jnp.float32)
    for f in range(feat):                                # feat is small & static
        mh = mh + jnp.where(vids == idx[:, f:f + 1], msk[:, f:f + 1], 0.0)

    fused = jnp.dot(mh, tab_ref[...], preferred_element_type=jnp.float32)  # (TM, 2H)
    o1_ref[...] = fused[:, :hidden]
    o2_ref[...] = fused[:, hidden:]


def embed_bag(idx_tm, msk_tm, tab_fused, hidden):
    rows, feat = idx_tm.shape
    v1 = tab_fused.shape[0]
    tm = _row_tile(rows)
    return pl.pallas_call(
        embed_kernel,
        out_shape=(jax.ShapeDtypeStruct((rows, hidden), jnp.float32),
                   jax.ShapeDtypeStruct((rows, hidden), jnp.float32)),
        grid=(rows // tm,),
        in_specs=[pl.BlockSpec((tm, feat), lambda i: (i, 0)),
                  pl.BlockSpec((tm, feat), lambda i: (i, 0)),
                  pl.BlockSpec((v1, 2 * hidden), lambda i: (0, 0))],
        out_specs=(pl.BlockSpec((tm, hidden), lambda i: (i, 0)),
                   pl.BlockSpec((tm, hidden), lambda i: (i, 0))),
        compiler_params=pltpu.CompilerParams(dimension_semantics=("parallel",)),
    )(idx_tm, msk_tm, tab_fused)


# -----------------------------------------------------------------------------
# Kernel 2: LSTM input projection for all 4 directions (hoisted out of the
# serial recurrence).  xproj[d, r] = e1[r] @ WihA[d] + dfeat[r] @ WihB[d] + b[d]
# -----------------------------------------------------------------------------
def xproj_kernel(e1_ref, df_ref, wA_ref, wB_ref, b_ref, out_ref):
    out_ref[...] = (
        jnp.dot(e1_ref[...], wA_ref[...], preferred_element_type=jnp.float32)
        + jnp.dot(df_ref[...], wB_ref[...], preferred_element_type=jnp.float32)
        + b_ref[...])


def lstm_input_proj(e1_tm, dfeat_tm, wA, wB, bias, hidden):
    rows = e1_tm.shape[0]
    h4 = 4 * hidden
    tm = _row_tile(rows)
    return pl.pallas_call(
        xproj_kernel,
        out_shape=jax.ShapeDtypeStruct((4, rows, h4), jnp.float32),
        grid=(4, rows // tm),
        in_specs=[pl.BlockSpec((tm, hidden), lambda d, i: (i, 0)),
                  pl.BlockSpec((tm, 3), lambda d, i: (i, 0)),
                  pl.BlockSpec((None, hidden, h4), lambda d, i: (d, 0, 0)),
                  pl.BlockSpec((None, 3, h4), lambda d, i: (d, 0, 0)),
                  pl.BlockSpec((None, 1, h4), lambda d, i: (d, 0, 0))],
        out_specs=pl.BlockSpec((None, tm, h4), lambda d, i: (d, i, 0)),
        compiler_params=pltpu.CompilerParams(
            dimension_semantics=("parallel", "parallel")),
    )(e1_tm, dfeat_tm, wA, wB, bias)


# -----------------------------------------------------------------------------
# Kernel 3: LSTM recurrence, 4 directions as a parallel grid axis.
# Per step: one fused (b, 4H) gate matmul, gate order i, f, g, o (torch).
# Backward directions (odd d) walk time in reverse inside the kernel.
# -----------------------------------------------------------------------------
def lstm_rec_kernel(xp_ref, whh_ref, out_ref, h_ref, c_ref):
    seq, bsz, hidden = out_ref.shape
    d = pl.program_id(0)
    reverse = d % 2

    h_ref[...] = jnp.zeros_like(h_ref)
    c_ref[...] = jnp.zeros_like(c_ref)
    whh = whh_ref[...]                                    # hoisted weight load

    def step(t, carry):
        tt = jnp.where(reverse == 1, seq - 1 - t, t)
        x_t = xp_ref[pl.ds(tt, 1)][0]                     # (b, 4H)
        gates = x_t + jnp.dot(h_ref[...], whh, preferred_element_type=jnp.float32)
        i_g = jax.nn.sigmoid(gates[:, :hidden])
        f_g = jax.nn.sigmoid(gates[:, hidden:2 * hidden])
        g_g = jnp.tanh(gates[:, 2 * hidden:3 * hidden])
        o_g = jax.nn.sigmoid(gates[:, 3 * hidden:])
        c_new = f_g * c_ref[...] + i_g * g_g
        h_new = o_g * jnp.tanh(c_new)
        c_ref[...] = c_new
        h_ref[...] = h_new
        out_ref[pl.ds(tt, 1)] = h_new[None, :, :]
        return carry

    lax.fori_loop(0, seq, step, 0)


def lstm_recurrence(xproj4, whh, seq, batch, hidden):
    h4 = 4 * hidden
    return pl.pallas_call(
        lstm_rec_kernel,
        out_shape=jax.ShapeDtypeStruct((4, seq, batch, hidden), jnp.float32),
        grid=(4,),
        in_specs=[pl.BlockSpec((None, seq, batch, h4), lambda d: (d, 0, 0, 0)),
                  pl.BlockSpec((None, hidden, h4), lambda d: (d, 0, 0))],
        out_specs=pl.BlockSpec((None, seq, batch, hidden), lambda d: (d, 0, 0, 0)),
        scratch_shapes=[pltpu.VMEM((batch, hidden), jnp.float32),
                        pltpu.VMEM((batch, hidden), jnp.float32)],
        compiler_params=pltpu.CompilerParams(dimension_semantics=("parallel",)),
    )(xproj4, whh)


# -----------------------------------------------------------------------------
# Kernel 4: attention weights, Beta, weighted context and output projection.
# Everything stays 2-D (rows = seq*batch, time-major); per-batch softmax /
# context sums are expressed with tiny selection-matrix matmuls so no reshape
# or concat of the fwd/bwd halves is needed.
# -----------------------------------------------------------------------------
def attn_kernel(lstm_ref, e2_ref, wa_ref, wb_ref, woutT_ref, out_ref):
    rows, hidden = e2_ref.shape
    bsz = out_ref.shape[0]

    o1f = lstm_ref[0]
    o1b = lstm_ref[1]
    o2f = lstm_ref[2]
    o2b = lstm_ref[3]

    # attention energies (rows, 1)
    e = (jnp.dot(o1f, wa_ref[0], preferred_element_type=jnp.float32)
         + jnp.dot(o1b, wa_ref[1], preferred_element_type=jnp.float32))
    e = e - jnp.max(e, axis=0, keepdims=True)             # softmax-invariant shift
    p = jnp.exp(e)                                        # (rows, 1)

    # selection matrices: time-major row r belongs to batch r % bsz
    sel_t = (lax.broadcasted_iota(jnp.int32, (bsz, rows), 1) % bsz
             == lax.broadcasted_iota(jnp.int32, (bsz, rows), 0)).astype(jnp.float32)
    sel = (lax.broadcasted_iota(jnp.int32, (rows, bsz), 0) % bsz
           == lax.broadcasted_iota(jnp.int32, (rows, bsz), 1)).astype(jnp.float32)

    denom_b = jnp.dot(sel_t, p, preferred_element_type=jnp.float32)    # (b, 1)
    denom_r = jnp.dot(sel, denom_b, preferred_element_type=jnp.float32)  # (rows, 1)
    alpha = p / denom_r                                                 # (rows, 1)

    beta = jnp.tanh(jnp.dot(o2f, wb_ref[0], preferred_element_type=jnp.float32)
                    + jnp.dot(o2b, wb_ref[1], preferred_element_type=jnp.float32))

    weighted = e2_ref[...] * beta * alpha                               # (rows, H)
    ctx = jnp.dot(sel_t, weighted, preferred_element_type=jnp.float32)  # (b, H)
    out_ref[...] = jnp.dot(ctx, woutT_ref[...],
                           preferred_element_type=jnp.float32)          # (b, C)


def attn_out(lstm2d, e2_tm, wa_pack, wb_pack, woutT, batch):
    num_classes = woutT.shape[1]
    return pl.pallas_call(
        attn_kernel,
        out_shape=jax.ShapeDtypeStruct((batch, num_classes), jnp.float32),
        in_specs=[VMEM_SPEC] * 5,
        out_specs=VMEM_SPEC,
    )(lstm2d, e2_tm, wa_pack, wb_pack, woutT)


# -----------------------------------------------------------------------------
# Parameter setup (shapes follow RETAIN_EX.__init__, time_ver=1, bidirectional).
# -----------------------------------------------------------------------------
def init_params(key, vocab, hidden, num_classes):
    d_in = hidden + 3
    ks = jax.random.split(key, 10)

    def rn(k, shape, scale=0.3):
        return (jax.random.normal(k, shape) * scale).astype(jnp.float32)

    def lstm_dir(k):
        k1, k2, k3, k4 = jax.random.split(k, 4)
        return dict(W_ih=rn(k1, (4 * hidden, d_in)),
                    W_hh=rn(k2, (4 * hidden, hidden)),
                    b_ih=rn(k3, (4 * hidden,)),
                    b_hh=rn(k4, (4 * hidden,)))

    emb1 = rn(ks[0], (vocab + 1, hidden)).at[vocab].set(0.0)   # padding_idx row
    emb2 = rn(ks[1], (vocab + 1, hidden)).at[vocab].set(0.0)
    return dict(
        emb1=emb1, emb2=emb2,
        rnn1=dict(fwd=lstm_dir(ks[2]), bwd=lstm_dir(ks[3])),
        rnn2=dict(fwd=lstm_dir(ks[4]), bwd=lstm_dir(ks[5])),
        wa=rn(ks[6], (1, 2 * hidden)),
        Wb=rn(ks[7], (hidden, 2 * hidden)),
        W_out=rn(ks[8], (num_classes, hidden)),
    )


def pack_lstm_all(params, hidden):
    """Stack the 4 directions (rnn1 fwd, rnn1 bwd, rnn2 fwd, rnn2 bwd)."""
    dirs = [params['rnn1']['fwd'], params['rnn1']['bwd'],
            params['rnn2']['fwd'], params['rnn2']['bwd']]

    def pack_dir(p):
        wihT = p['W_ih'].T                       # (H+3, 4H), gate cols [i|f|g|o]
        whhT = p['W_hh'].T                       # (H, 4H)
        b = (p['b_ih'] + p['b_hh']).reshape(1, 4 * hidden)
        return wihT[:hidden], wihT[hidden:], whhT, b

    packed = [pack_dir(p) for p in dirs]
    wA = jnp.stack([p[0] for p in packed])       # (4, H, 4H)
    wB = jnp.stack([p[1] for p in packed])       # (4, 3, 4H)
    whh = jnp.stack([p[2] for p in packed])      # (4, H, 4H)
    bias = jnp.stack([p[3] for p in packed])     # (4, 1, 4H)
    return wA, wB, whh, bias


# -----------------------------------------------------------------------------
# Full forward pass (Pallas kernels + small scalar-sized JAX glue).
# -----------------------------------------------------------------------------
@functools.partial(jax.jit, static_argnames=("hidden", "num_classes"))
def retain_ex_forward(inputs, mask, dates, params, *, hidden, num_classes):
    b, seq, feat = inputs.shape
    rows = seq * b

    # cheap time-major flattening of the tiny index / mask / date tensors
    idx_tm = jnp.swapaxes(inputs, 0, 1).reshape(rows, feat).astype(jnp.int32)
    msk_tm = jnp.swapaxes(mask, 0, 1).reshape(rows, feat).astype(jnp.float32)
    dts_tm = jnp.swapaxes(dates, 0, 1).reshape(rows)
    dfeat_tm = jnp.stack([dts_tm, 1.0 / (dts_tm + 1.0),
                          1.0 / jnp.log(jnp.e + dts_tm)], axis=-1).astype(jnp.float32)

    # fused embedding bag (emb1 feeds the LSTM, emb2 feeds the attention)
    tab_fused = jnp.concatenate([params['emb1'], params['emb2']], axis=1)
    e1_tm, e2_tm = embed_bag(idx_tm, msk_tm, tab_fused, hidden)       # (rows, H) x2

    # hoisted input projection + recurrence over the 4 directions
    wA, wB, whh, bias = pack_lstm_all(params, hidden)
    xproj = lstm_input_proj(e1_tm, dfeat_tm, wA, wB, bias, hidden)    # (4, rows, 4H)
    xproj4 = xproj.reshape(4, seq, b, 4 * hidden)                     # free reshape
    lstm_out = lstm_recurrence(xproj4, whh, seq, b, hidden)           # (4, seq, b, H)
    lstm2d = lstm_out.reshape(4, rows, hidden)                        # free reshape

    # attention + output projection
    wa = params['wa']                                                 # (1, 2H)
    wa_pack = jnp.stack([wa[0, :hidden].reshape(hidden, 1),
                         wa[0, hidden:].reshape(hidden, 1)])          # (2, H, 1)
    wbT = params['Wb'].T                                              # (2H, H)
    wb_pack = jnp.stack([wbT[:hidden], wbT[hidden:]])                 # (2, H, H)
    woutT = params['W_out'].T                                         # (H, C)

    return attn_out(lstm2d, e2_tm, wa_pack, wb_pack, woutT, b)        # (b, C)


# -----------------------------------------------------------------------------
# Pure-JAX reference (mirrors the PyTorch forward exactly) for validation.
# -----------------------------------------------------------------------------
def ref_lstm_dir(x, p, hidden, reverse):
    xs = jnp.swapaxes(x, 0, 1)
    if reverse:
        xs = jnp.flip(xs, 0)
    b = x.shape[0]

    def step(carry, x_t):
        h, c = carry
        gates = x_t @ p['W_ih'].T + h @ p['W_hh'].T + p['b_ih'] + p['b_hh']
        i = jax.nn.sigmoid(gates[:, :hidden])
        f = jax.nn.sigmoid(gates[:, hidden:2 * hidden])
        g = jnp.tanh(gates[:, 2 * hidden:3 * hidden])
        o = jax.nn.sigmoid(gates[:, 3 * hidden:])
        c = f * c + i * g
        h = o * jnp.tanh(c)
        return (h, c), h

    init = (jnp.zeros((b, hidden), jnp.float32), jnp.zeros((b, hidden), jnp.float32))
    _, hs = lax.scan(step, init, xs)
    if reverse:
        hs = jnp.flip(hs, 0)
    return jnp.swapaxes(hs, 0, 1)


def reference_forward(inputs, mask, dates, params, hidden):
    embedded = (params['emb1'][inputs] * mask[..., None]).sum(2)
    embedded2 = (params['emb2'][inputs] * mask[..., None]).sum(2)
    dfeat = jnp.stack([dates, 1.0 / (dates + 1.0), 1.0 / jnp.log(jnp.e + dates)], 2)
    x = jnp.concatenate([embedded, dfeat], 2)

    def bid(p):
        return jnp.concatenate([ref_lstm_dir(x, p['fwd'], hidden, False),
                                ref_lstm_dir(x, p['bwd'], hidden, True)], -1)

    o1 = bid(params['rnn1'])
    o2 = bid(params['rnn2'])
    E = jnp.einsum('bsd,od->bso', o1, params['wa'])[..., 0]
    alpha = jax.nn.softmax(E, axis=1)
    beta = jnp.tanh(jnp.einsum('bsd,hd->bsh', o2, params['Wb']))
    ctx = (embedded2 * beta * alpha[..., None]).sum(1)
    return ctx @ params['W_out'].T


if __name__ == "__main__":
    BATCH, SEQ, FEAT = 2, 8, 4
    VOCAB, HIDDEN, NUM_CLASSES = 16, 32, 5

    key = jax.random.PRNGKey(0)
    kp, ki, km, kd = jax.random.split(key, 4)
    params = init_params(kp, VOCAB, HIDDEN, NUM_CLASSES)

    inputs = jax.random.randint(ki, (BATCH, SEQ, FEAT), 0, VOCAB + 1)  # may hit padding idx
    mask = jax.random.bernoulli(km, 0.7, (BATCH, SEQ, FEAT)).astype(jnp.float32)
    dates = jax.random.uniform(kd, (BATCH, SEQ), minval=0.0, maxval=10.0)

    logits = retain_ex_forward(inputs, mask, dates, params,
                               hidden=HIDDEN, num_classes=NUM_CLASSES)
    logits = jax.block_until_ready(logits)

    ref = reference_forward(inputs, mask, dates, params, HIDDEN)
    assert logits.shape == (BATCH, NUM_CLASSES)
    assert jnp.allclose(logits, ref, atol=5e-3, rtol=5e-2), (
        f"mismatch: max abs diff {jnp.max(jnp.abs(logits - ref))}")
    print("KERNEL_OK")
</pallas_src>

<mosaic_0001>
module attributes {stable_mosaic.version = 11 : i64} {
  func.func @lstm_rec_kernel(%arg0: i32, %arg1: memref<1x8x2x128xf32, #tpu.memory_space<vmem>>, %arg2: memref<1x32x128xf32, #tpu.memory_space<vmem>>, %arg3: memref<1x8x2x32xf32, #tpu.memory_space<vmem>>, %arg4: memref<2x32xf32, #tpu.memory_space<vmem>>, %arg5: memref<2x32xf32, #tpu.memory_space<vmem>>) attributes {dimension_semantics = [#tpu.dimension_semantics<parallel>], iteration_bounds = array<i64: 4>, scalar_prefetch = 0 : i64, scratch_operands = 2 : i64, tpu.core_type = #tpu.core_type<tc>, window_params = [{transform_indices = @transform_0, window_bounds = array<i64: 1, 8, 2, 128>}, {transform_indices = @transform_1, window_bounds = array<i64: 1, 32, 128>}, {transform_indices = @transform_2, window_bounds = array<i64: 1, 8, 2, 32>}]} {
    %c2_i32 = arith.constant 2 : i32
    %c0_i32 = arith.constant 0 : i32
    %0 = arith.cmpi eq, %c2_i32, %c0_i32 : i32
    %c1_i32 = arith.constant 1 : i32
    %1 = arith.select %0, %c1_i32, %c2_i32 : i32
    %2 = arith.remsi %arg0, %1 : i32
    %c0_i32_0 = arith.constant 0 : i32
    %3 = arith.cmpi ne, %2, %c0_i32_0 : i32
    %c0_i32_1 = arith.constant 0 : i32
    %4 = arith.cmpi slt, %2, %c0_i32_1 : i32
    %c0_i32_2 = arith.constant 0 : i32
    %5 = arith.cmpi slt, %1, %c0_i32_2 : i32
    %6 = arith.xori %4, %5 : i1
    %7 = arith.andi %6, %3 : i1
    %8 = arith.addi %2, %1 : i32
    %9 = arith.select %7, %8, %2 : i32
    %cst = arith.constant 0.000000e+00 : f32
    %10 = vector.broadcast %cst : f32 to vector<2x32xf32>
    %c0 = arith.constant 0 : index
    %c0_3 = arith.constant 0 : index
    %11 = vector.load %arg4[%c0, %c0_3] : memref<2x32xf32, #tpu.memory_space<vmem>>, vector<2x32xf32>
    tpu.vector_store %arg4[%c0, %c0_3], %10 {strides = array<i32>} : memref<2x32xf32, #tpu.memory_space<vmem>>, vector<2x32xf32>,
    %cst_4 = arith.constant 0.000000e+00 : f32
    %12 = vector.broadcast %cst_4 : f32 to vector<2x32xf32>
    %c0_5 = arith.constant 0 : index
    %c0_6 = arith.constant 0 : index
    %13 = vector.load %arg5[%c0_5, %c0_6] : memref<2x32xf32, #tpu.memory_space<vmem>>, vector<2x32xf32>
    tpu.vector_store %arg5[%c0_5, %c0_6], %12 {strides = array<i32>} : memref<2x32xf32, #tpu.memory_space<vmem>>, vector<2x32xf32>,
    %c0_7 = arith.constant 0 : index
    %c0_8 = arith.constant 0 : index
    %c0_9 = arith.constant 0 : index
    %14 = vector.load %arg2[%c0_7, %c0_8, %c0_9] : memref<1x32x128xf32, #tpu.memory_space<vmem>>, vector<1x32x128xf32>
    %15 = vector.shape_cast %14 : vector<1x32x128xf32> to vector<32x128xf32>
    %c0_i32_10 = arith.constant 0 : i32
    %c8_i32 = arith.constant 8 : i32
    %16 = arith.addi %c0_i32_10, %c8_i32 : i32
    %c1_i32_11 = arith.constant 1 : i32
    scf.for %arg6 = %c0_i32_10 to %16 step %c1_i32_11  : i32 {
      %c1_i32_13 = arith.constant 1 : i32
      %17 = arith.cmpi eq, %9, %c1_i32_13 : i32
      %c7_i32 = arith.constant 7 : i32
      %18 = arith.subi %c7_i32, %arg6 : i32
      %19 = arith.select %17, %18, %arg6 : i32
      %c0_14 = arith.constant 0 : index
      %20 = arith.index_cast %19 : i32 to index
      %c0_15 = arith.constant 0 : index
      %c0_16 = arith.constant 0 : index
      %21 = vector.load %arg1[%c0_14, %20, %c0_15, %c0_16] : memref<1x8x2x128xf32, #tpu.memory_space<vmem>>, vector<1x1x2x128xf32>
      %22 = vector.shape_cast %21 : vector<1x1x2x128xf32> to vector<1x2x128xf32>
      %23 = vector.shape_cast %22 : vector<1x2x128xf32> to vector<2x128xf32>
      %c0_17 = arith.constant 0 : index
      %c0_18 = arith.constant 0 : index
      %24 = vector.load %arg4[%c0_17, %c0_18] : memref<2x32xf32, #tpu.memory_space<vmem>>, vector<2x32xf32>
      %cst_19 = arith.constant dense<0.000000e+00> : vector<2x128xf32>
      %25 = tpu.matmul %24, %15, %cst_19 {dimension_numbers = #tpu.dot_dimension_numbers<[1], [0], [0], [1], [0, 0, 1, 1], [], []>} : vector<2x32xf32>, vector<32x128xf32>, vector<2x128xf32> -> vector<2x128xf32>
      %26 = arith.addf %23, %25 : vector<2x128xf32>
      %27 = vector.extract_strided_slice %26 {offsets = [0, 0], sizes = [2, 32], strides = [1, 1]} : vector<2x128xf32> to vector<2x32xf32>
      %28 = arith.negf %27 : vector<2x32xf32>
      %29 = math.exp %28 : vector<2x32xf32>
      %cst_20 = arith.constant 1.000000e+00 : f32
      %30 = vector.broadcast %cst_20 : f32 to vector<2x32xf32>
      %31 = arith.addf %30, %29 : vector<2x32xf32>
      %32 = arith.divf %30, %31 : vector<2x32xf32>
      %33 = vector.extract_strided_slice %26 {offsets = [0, 32], sizes = [2, 32], strides = [1, 1]} : vector<2x128xf32> to vector<2x32xf32>
      %34 = arith.negf %33 : vector<2x32xf32>
      %35 = math.exp %34 : vector<2x32xf32>
      %cst_21 = arith.constant 1.000000e+00 : f32
      %36 = vector.broadcast %cst_21 : f32 to vector<2x32xf32>
      %37 = arith.addf %36, %35 : vector<2x32xf32>
      %38 = arith.divf %36, %37 : vector<2x32xf32>
      %39 = vector.extract_strided_slice %26 {offsets = [0, 64], sizes = [2, 32], strides = [1, 1]} : vector<2x128xf32> to vector<2x32xf32>
      %40 = math.tanh %39 : vector<2x32xf32>
      %41 = vector.extract_strided_slice %26 {offsets = [0, 96], sizes = [2, 32], strides = [1, 1]} : vector<2x128xf32> to vector<2x32xf32>
      %42 = arith.negf %41 : vector<2x32xf32>
      %43 = math.exp %42 : vector<2x32xf32>
      %cst_22 = arith.constant 1.000000e+00 : f32
      %44 = vector.broadcast %cst_22 : f32 to vector<2x32xf32>
      %45 = arith.addf %44, %43 : vector<2x32xf32>
      %46 = arith.divf %44, %45 : vector<2x32xf32>
      %c0_23 = arith.constant 0 : index
      %c0_24 = arith.constant 0 : index
      %47 = vector.load %arg5[%c0_23, %c0_24] : memref<2x32xf32, #tpu.memory_space<vmem>>, vector<2x32xf32>
      %48 = arith.mulf %38, %47 : vector<2x32xf32>
      %49 = arith.mulf %32, %40 : vector<2x32xf32>
      %50 = arith.addf %48, %49 : vector<2x32xf32>
      %51 = math.tanh %50 : vector<2x32xf32>
      %52 = arith.mulf %46, %51 : vector<2x32xf32>
      %c0_25 = arith.constant 0 : index
      %c0_26 = arith.constant 0 : index
      %53 = vector.load %arg5[%c0_25, %c0_26] : memref<2x32xf32, #tpu.memory_space<vmem>>, vector<2x32xf32>
      tpu.vector_store %arg5[%c0_25, %c0_26], %50 {strides = array<i32>} : memref<2x32xf32, #tpu.memory_space<vmem>>, vector<2x32xf32>,
      %c0_27 = arith.constant 0 : index
      %c0_28 = arith.constant 0 : index
      %54 = vector.load %arg4[%c0_27, %c0_28] : memref<2x32xf32, #tpu.memory_space<vmem>>, vector<2x32xf32>
      tpu.vector_store %arg4[%c0_27, %c0_28], %52 {strides = array<i32>} : memref<2x32xf32, #tpu.memory_space<vmem>>, vector<2x32xf32>,
      %55 = vector.shape_cast %52 : vector<2x32xf32> to vector<1x2x32xf32>
      %c0_29 = arith.constant 0 : index
      %56 = arith.index_cast %19 : i32 to index
      %c0_30 = arith.constant 0 : index
      %c0_31 = arith.constant 0 : index
      %57 = vector.load %arg3[%c0_29, %56, %c0_30, %c0_31] : memref<1x8x2x32xf32, #tpu.memory_space<vmem>>, vector<1x1x2x32xf32>
      %58 = vector.shape_cast %57 : vector<1x1x2x32xf32> to vector<1x2x32xf32>
      %59 = vector.shape_cast %55 : vector<1x2x32xf32> to vector<1x1x2x32xf32>
      tpu.vector_store %arg3[%c0_29, %56, %c0_30, %c0_31], %59 {strides = array<i32>} : memref<1x8x2x32xf32, #tpu.memory_space<vmem>>, vector<1x1x2x32xf32>,
    }
    %c8_i32_12 = arith.constant 8 : i32
    return
  }
  func.func @transform_0(%arg0: i32) -> (i32, i32, i32, i32) {
    %c0_i32 = arith.constant 0 : i32
    %c0_i32_0 = arith.constant 0 : i32
    %c0_i32_1 = arith.constant 0 : i32
    %c0_i32_2 = arith.constant 0 : i32
    return %arg0, %c0_i32, %c0_i32_0, %c0_i32_1 : i32, i32, i32, i32
  }
  func.func @transform_1(%arg0: i32) -> (i32, i32, i32) {
    %c0_i32 = arith.constant 0 : i32
    %c0_i32_0 = arith.constant 0 : i32
    %c0_i32_1 = arith.constant 0 : i32
    return %arg0, %c0_i32, %c0_i32_0 : i32, i32, i32
  }
  func.func @transform_2(%arg0: i32) -> (i32, i32, i32, i32) {
    %c0_i32 = arith.constant 0 : i32
    %c0_i32_0 = arith.constant 0 : i32
    %c0_i32_1 = arith.constant 0 : i32
    %c0_i32_2 = arith.constant 0 : i32
    return %arg0, %c0_i32, %c0_i32_0, %c0_i32_1 : i32, i32, i32, i32
  }
}

module attributes {stable_mosaic.version = 11 : i64} {
  func.func @xproj_kernel(%arg0: i32, %arg1: i32, %arg2: memref<8x32xf32, #tpu.memory_space<vmem>>, %arg3: memref<8x3xf32, #tpu.memory_space<vmem>>, %arg4: memref<1x32x128xf32, #tpu.memory_space<vmem>>, %arg5: memref<1x3x128xf32, #tpu.memory_space<vmem>>, %arg6: memref<1x1x128xf32, #tpu.memory_space<vmem>>, %arg7: memref<1x8x128xf32, #tpu.memory_space<vmem>>) attributes {dimension_semantics = [#tpu.dimension_semantics<parallel>, #tpu.dimension_semantics<parallel>], iteration_bounds = array<i64: 4, 2>, scalar_prefetch = 0 : i64, scratch_operands = 0 : i64, tpu.core_type = #tpu.core_type<tc>, window_params = [{transform_indices = @transform_0, window_bounds = array<i64: 8, 32>}, {transform_indices = @transform_1, window_bounds = array<i64: 8, 3>}, {transform_indices = @transform_2, window_bounds = array<i64: 1, 32, 128>}, {transform_indices = @transform_3, window_bounds = array<i64: 1, 3, 128>}, {transform_indices = @transform_4, window_bounds = array<i64: 1, 1, 128>}, {transform_indices = @transform_5, window_bounds = array<i64: 1, 8, 128>}]} {
    %c0 = arith.constant 0 : index
    %c0_0 = arith.constant 0 : index
    %0 = vector.load %arg2[%c0, %c0_0] : memref<8x32xf32, #tpu.memory_space<vmem>>, vector<8x32xf32>
    %c0_1 = arith.constant 0 : index
    %c0_2 = arith.constant 0 : index
    %c0_3 = arith.constant 0 : index
    %1 = vector.load %arg4[%c0_1, %c0_2, %c0_3] : memref<1x32x128xf32, #tpu.memory_space<vmem>>, vector<1x32x128xf32>
    %2 = vector.shape_cast %1 : vector<1x32x128xf32> to vector<32x128xf32>
    %cst = arith.constant dense<0.000000e+00> : vector<8x128xf32>
    %3 = tpu.matmul %0, %2, %cst {dimension_numbers = #tpu.dot_dimension_numbers<[1], [0], [0], [1], [0, 0, 1, 1], [], []>} : vector<8x32xf32>, vector<32x128xf32>, vector<8x128xf32> -> vector<8x128xf32>
    %c0_4 = arith.constant 0 : index
    %c0_5 = arith.constant 0 : index
    %4 = vector.load %arg3[%c0_4, %c0_5] : memref<8x3xf32, #tpu.memory_space<vmem>>, vector<8x3xf32>
    %c0_6 = arith.constant 0 : index
    %c0_7 = arith.constant 0 : index
    %c0_8 = arith.constant 0 : index
    %5 = vector.load %arg5[%c0_6, %c0_7, %c0_8] : memref<1x3x128xf32, #tpu.memory_space<vmem>>, vector<1x3x128xf32>
    %6 = vector.shape_cast %5 : vector<1x3x128xf32> to vector<3x128xf32>
    %cst_9 = arith.constant dense<0.000000e+00> : vector<8x128xf32>
    %7 = tpu.matmul %4, %6, %cst_9 {dimension_numbers = #tpu.dot_dimension_numbers<[1], [0], [0], [1], [0, 0, 1, 1], [], []>} : vector<8x3xf32>, vector<3x128xf32>, vector<8x128xf32> -> vector<8x128xf32>
    %8 = arith.addf %3, %7 : vector<8x128xf32>
    %c0_10 = arith.constant 0 : index
    %c0_11 = arith.constant 0 : index
    %c0_12 = arith.constant 0 : index
    %9 = vector.load %arg6[%c0_10, %c0_11, %c0_12] : memref<1x1x128xf32, #tpu.memory_space<vmem>>, vector<1x1x128xf32>
    %10 = vector.shape_cast %9 : vector<1x1x128xf32> to vector<1x128xf32>
    %11 = vector.broadcast %10 : vector<1x128xf32> to vector<8x128xf32>
    %12 = arith.addf %8, %11 : vector<8x128xf32>
    %c0_13 = arith.constant 0 : index
    %c0_14 = arith.constant 0 : index
    %c0_15 = arith.constant 0 : index
    %13 = vector.load %arg7[%c0_13, %c0_14, %c0_15] : memref<1x8x128xf32, #tpu.memory_space<vmem>>, vector<1x8x128xf32>
    %14 = vector.shape_cast %13 : vector<1x8x128xf32> to vector<8x128xf32>
    %15 = vector.shape_cast %12 : vector<8x128xf32> to vector<1x8x128xf32>
    tpu.vector_store %arg7[%c0_13, %c0_14, %c0_15], %15 {strides = array<i32>} : memref<1x8x128xf32, #tpu.memory_space<vmem>>, vector<1x8x128xf32>,
    return
  }
  func.func @transform_0(%arg0: i32, %arg1: i32) -> (i32, i32) {
    %c0_i32 = arith.constant 0 : i32
    %c0_i32_0 = arith.constant 0 : i32
    return %arg1, %c0_i32 : i32, i32
  }
  func.func @transform_1(%arg0: i32, %arg1: i32) -> (i32, i32) {
    %c0_i32 = arith.constant 0 : i32
    %c0_i32_0 = arith.constant 0 : i32
    return %arg1, %c0_i32 : i32, i32
  }
  func.func @transform_2(%arg0: i32, %arg1: i32) -> (i32, i32, i32) {
    %c0_i32 = arith.constant 0 : i32
    %c0_i32_0 = arith.constant 0 : i32
    %c0_i32_1 = arith.constant 0 : i32
    return %arg0, %c0_i32, %c0_i32_0 : i32, i32, i32
  }
  func.func @transform_3(%arg0: i32, %arg1: i32) -> (i32, i32, i32) {
    %c0_i32 = arith.constant 0 : i32
    %c0_i32_0 = arith.constant 0 : i32
    %c0_i32_1 = arith.constant 0 : i32
    return %arg0, %c0_i32, %c0_i32_0 : i32, i32, i32
  }
  func.func @transform_4(%arg0: i32, %arg1: i32) -> (i32, i32, i32) {
    %c0_i32 = arith.constant 0 : i32
    %c0_i32_0 = arith.constant 0 : i32
    %c0_i32_1 = arith.constant 0 : i32
    return %arg0, %c0_i32, %c0_i32_0 : i32, i32, i32
  }
  func.func @transform_5(%arg0: i32, %arg1: i32) -> (i32, i32, i32) {
    %c0_i32 = arith.constant 0 : i32
    %c0_i32_0 = arith.constant 0 : i32
    return %arg0, %arg1, %c0_i32 : i32, i32, i32
  }
}

module attributes {stable_mosaic.version = 11 : i64} {
  func.func @embed_kernel(%arg0: i32, %arg1: memref<8x4xi32, #tpu.memory_space<vmem>>, %arg2: memref<8x4xf32, #tpu.memory_space<vmem>>, %arg3: memref<17x64xf32, #tpu.memory_space<vmem>>, %arg4: memref<8x32xf32, #tpu.memory_space<vmem>>, %arg5: memref<8x32xf32, #tpu.memory_space<vmem>>) attributes {dimension_semantics = [#tpu.dimension_semantics<parallel>], iteration_bounds = array<i64: 2>, scalar_prefetch = 0 : i64, scratch_operands = 0 : i64, tpu.core_type = #tpu.core_type<tc>, window_params = [{transform_indices = @transform_0, window_bounds = array<i64: 8, 4>}, {transform_indices = @transform_1, window_bounds = array<i64: 8, 4>}, {pipeline_mode = #tpu.pipeline_mode<synchronous>, transform_indices = @transform_2, window_bounds = array<i64: 17, 64>}, {transform_indices = @transform_3, window_bounds = array<i64: 8, 32>}, {transform_indices = @transform_4, window_bounds = array<i64: 8, 32>}]} {
    %c0 = arith.constant 0 : index
    %c0_0 = arith.constant 0 : index
    %0 = vector.load %arg1[%c0, %c0_0] : memref<8x4xi32, #tpu.memory_space<vmem>>, vector<8x4xi32>
    %c0_1 = arith.constant 0 : index
    %c0_2 = arith.constant 0 : index
    %1 = vector.load %arg2[%c0_1, %c0_2] : memref<8x4xf32, #tpu.memory_space<vmem>>, vector<8x4xf32>
    %2 = tpu.iota {dimensions = array<i32: 1>} : vector<8x17xi32>
    %cst = arith.constant 0.000000e+00 : f32
    %3 = vector.broadcast %cst : f32 to vector<8x17xf32>
    %4 = vector.extract_strided_slice %0 {offsets = [0, 0], sizes = [8, 1], strides = [1, 1]} : vector<8x4xi32> to vector<8x1xi32>
    %5 = vector.broadcast %4 : vector<8x1xi32> to vector<8x17xi32>
    %6 = arith.cmpi eq, %2, %5 : vector<8x17xi32>
    %7 = vector.extract_strided_slice %1 {offsets = [0, 0], sizes = [8, 1], strides = [1, 1]} : vector<8x4xf32> to vector<8x1xf32>
    %cst_3 = arith.constant 0.000000e+00 : f32
    %8 = vector.shape_cast %7 : vector<8x1xf32> to vector<8x1xf32>
    %9 = vector.broadcast %8 : vector<8x1xf32> to vector<8x17xf32>
    %10 = vector.broadcast %cst_3 : f32 to vector<8x17xf32>
    %11 = arith.select %6, %9, %10 : vector<8x17xi1>, vector<8x17xf32>
    %12 = arith.addf %3, %11 : vector<8x17xf32>
    %13 = vector.extract_strided_slice %0 {offsets = [0, 1], sizes = [8, 1], strides = [1, 1]} : vector<8x4xi32> to vector<8x1xi32>
    %14 = vector.broadcast %13 : vector<8x1xi32> to vector<8x17xi32>
    %15 = arith.cmpi eq, %2, %14 : vector<8x17xi32>
    %16 = vector.extract_strided_slice %1 {offsets = [0, 1], sizes = [8, 1], strides = [1, 1]} : vector<8x4xf32> to vector<8x1xf32>
    %cst_4 = arith.constant 0.000000e+00 : f32
    %17 = vector.shape_cast %16 : vector<8x1xf32> to vector<8x1xf32>
    %18 = vector.broadcast %17 : vector<8x1xf32> to vector<8x17xf32>
    %19 = vector.broadcast %cst_4 : f32 to vector<8x17xf32>
    %20 = arith.select %15, %18, %19 : vector<8x17xi1>, vector<8x17xf32>
    %21 = arith.addf %12, %20 : vector<8x17xf32>
    %22 = vector.extract_strided_slice %0 {offsets = [0, 2], sizes = [8, 1], strides = [1, 1]} : vector<8x4xi32> to vector<8x1xi32>
    %23 = vector.broadcast %22 : vector<8x1xi32> to vector<8x17xi32>
    %24 = arith.cmpi eq, %2, %23 : vector<8x17xi32>
    %25 = vector.extract_strided_slice %1 {offsets = [0, 2], sizes = [8, 1], strides = [1, 1]} : vector<8x4xf32> to vector<8x1xf32>
    %cst_5 = arith.constant 0.000000e+00 : f32
    %26 = vector.shape_cast %25 : vector<8x1xf32> to vector<8x1xf32>
    %27 = vector.broadcast %26 : vector<8x1xf32> to vector<8x17xf32>
    %28 = vector.broadcast %cst_5 : f32 to vector<8x17xf32>
    %29 = arith.select %24, %27, %28 : vector<8x17xi1>, vector<8x17xf32>
    %30 = arith.addf %21, %29 : vector<8x17xf32>
    %31 = vector.extract_strided_slice %0 {offsets = [0, 3], sizes = [8, 1], strides = [1, 1]} : vector<8x4xi32> to vector<8x1xi32>
    %32 = vector.broadcast %31 : vector<8x1xi32> to vector<8x17xi32>
    %33 = arith.cmpi eq, %2, %32 : vector<8x17xi32>
    %34 = vector.extract_strided_slice %1 {offsets = [0, 3], sizes = [8, 1], strides = [1, 1]} : vector<8x4xf32> to vector<8x1xf32>
    %cst_6 = arith.constant 0.000000e+00 : f32
    %35 = vector.shape_cast %34 : vector<8x1xf32> to vector<8x1xf32>
    %36 = vector.broadcast %35 : vector<8x1xf32> to vector<8x17xf32>
    %37 = vector.broadcast %cst_6 : f32 to vector<8x17xf32>
    %38 = arith.select %33, %36, %37 : vector<8x17xi1>, vector<8x17xf32>
    %39 = arith.addf %30, %38 : vector<8x17xf32>
    %c0_7 = arith.constant 0 : index
    %c0_8 = arith.constant 0 : index
    %40 = vector.load %arg3[%c0_7, %c0_8] : memref<17x64xf32, #tpu.memory_space<vmem>>, vector<17x64xf32>
    %cst_9 = arith.constant dense<0.000000e+00> : vector<8x64xf32>
    %41 = tpu.matmul %39, %40, %cst_9 {dimension_numbers = #tpu.dot_dimension_numbers<[1], [0], [0], [1], [0, 0, 1, 1], [], []>} : vector<8x17xf32>, vector<17x64xf32>, vector<8x64xf32> -> vector<8x64xf32>
    %42 = vector.extract_strided_slice %41 {offsets = [0, 0], sizes = [8, 32], strides = [1, 1]} : vector<8x64xf32> to vector<8x32xf32>
    %c0_10 = arith.constant 0 : index
    %c0_11 = arith.constant 0 : index
    %43 = vector.load %arg4[%c0_10, %c0_11] : memref<8x32xf32, #tpu.memory_space<vmem>>, vector<8x32xf32>
    tpu.vector_store %arg4[%c0_10, %c0_11], %42 {strides = array<i32>} : memref<8x32xf32, #tpu.memory_space<vmem>>, vector<8x32xf32>,
    %44 = vector.extract_strided_slice %41 {offsets = [0, 32], sizes = [8, 32], strides = [1, 1]} : vector<8x64xf32> to vector<8x32xf32>
    %c0_12 = arith.constant 0 : index
    %c0_13 = arith.constant 0 : index
    %45 = vector.load %arg5[%c0_12, %c0_13] : memref<8x32xf32, #tpu.memory_space<vmem>>, vector<8x32xf32>
    tpu.vector_store %arg5[%c0_12, %c0_13], %44 {strides = array<i32>} : memref<8x32xf32, #tpu.memory_space<vmem>>, vector<8x32xf32>,
    return
  }
  func.func @transform_0(%arg0: i32) -> (i32, i32) {
    %c0_i32 = arith.constant 0 : i32
    %c0_i32_0 = arith.constant 0 : i32
    return %arg0, %c0_i32 : i32, i32
  }
  func.func @transform_1(%arg0: i32) -> (i32, i32) {
    %c0_i32 = arith.constant 0 : i32
    %c0_i32_0 = arith.constant 0 : i32
    return %arg0, %c0_i32 : i32, i32
  }
  func.func @transform_2(%arg0: i32) -> (i32, i32) {
    %c0_i32 = arith.constant 0 : i32
    %c0_i32_0 = arith.constant 0 : i32
    %c0_i32_1 = arith.constant 0 : i32
    return %c0_i32, %c0_i32_0 : i32, i32
  }
  func.func @transform_3(%arg0: i32) -> (i32, i32) {
    %c0_i32 = arith.constant 0 : i32
    %c0_i32_0 = arith.constant 0 : i32
    return %arg0, %c0_i32 : i32, i32
  }
  func.func @transform_4(%arg0: i32) -> (i32, i32) {
    %c0_i32 = arith.constant 0 : i32
    %c0_i32_0 = arith.constant 0 : i32
    return %arg0, %c0_i32 : i32, i32
  }
}

module attributes {stable_mosaic.version = 11 : i64} {
  func.func @attn_kernel(%arg0: memref<4x16x32xf32, #tpu.memory_space<vmem>>, %arg1: memref<16x32xf32, #tpu.memory_space<vmem>>, %arg2: memref<2x32x1xf32, #tpu.memory_space<vmem>>, %arg3: memref<2x32x32xf32, #tpu.memory_space<vmem>>, %arg4: memref<32x5xf32, #tpu.memory_space<vmem>>, %arg5: memref<2x5xf32, #tpu.memory_space<vmem>>) attributes {dimension_semantics = [], scalar_prefetch = 0 : i64, scratch_operands = 0 : i64, tpu.core_type = #tpu.core_type<tc>} {
    %c0 = arith.constant 0 : index
    %c0_0 = arith.constant 0 : index
    %c0_1 = arith.constant 0 : index
    %0 = vector.load %arg0[%c0, %c0_0, %c0_1] : memref<4x16x32xf32, #tpu.memory_space<vmem>>, vector<1x16x32xf32>
    %1 = vector.shape_cast %0 : vector<1x16x32xf32> to vector<16x32xf32>
    %c1 = arith.constant 1 : index
    %c0_2 = arith.constant 0 : index
    %c0_3 = arith.constant 0 : index
    %2 = vector.load %arg0[%c1, %c0_2, %c0_3] : memref<4x16x32xf32, #tpu.memory_space<vmem>>, vector<1x16x32xf32>
    %3 = vector.shape_cast %2 : vector<1x16x32xf32> to vector<16x32xf32>
    %c2 = arith.constant 2 : index
    %c0_4 = arith.constant 0 : index
    %c0_5 = arith.constant 0 : index
    %4 = vector.load %arg0[%c2, %c0_4, %c0_5] : memref<4x16x32xf32, #tpu.memory_space<vmem>>, vector<1x16x32xf32>
    %5 = vector.shape_cast %4 : vector<1x16x32xf32> to vector<16x32xf32>
    %c3 = arith.constant 3 : index
    %c0_6 = arith.constant 0 : index
    %c0_7 = arith.constant 0 : index
    %6 = vector.load %arg0[%c3, %c0_6, %c0_7] : memref<4x16x32xf32, #tpu.memory_space<vmem>>, vector<1x16x32xf32>
    %7 = vector.shape_cast %6 : vector<1x16x32xf32> to vector<16x32xf32>
    %c0_8 = arith.constant 0 : index
    %c0_9 = arith.constant 0 : index
    %c0_10 = arith.constant 0 : index
    %8 = vector.load %arg2[%c0_8, %c0_9, %c0_10] : memref<2x32x1xf32, #tpu.memory_space<vmem>>, vector<1x32x1xf32>
    %9 = vector.shape_cast %8 : vector<1x32x1xf32> to vector<32x1xf32>
    %cst = arith.constant dense<0.000000e+00> : vector<16x1xf32>
    %10 = tpu.matmul %1, %9, %cst {dimension_numbers = #tpu.dot_dimension_numbers<[1], [0], [0], [1], [0, 0, 1, 1], [], []>} : vector<16x32xf32>, vector<32x1xf32>, vector<16x1xf32> -> vector<16x1xf32>
    %c1_11 = arith.constant 1 : index
    %c0_12 = arith.constant 0 : index
    %c0_13 = arith.constant 0 : index
    %11 = vector.load %arg2[%c1_11, %c0_12, %c0_13] : memref<2x32x1xf32, #tpu.memory_space<vmem>>, vector<1x32x1xf32>
    %12 = vector.shape_cast %11 : vector<1x32x1xf32> to vector<32x1xf32>
    %cst_14 = arith.constant dense<0.000000e+00> : vector<16x1xf32>
    %13 = tpu.matmul %3, %12, %cst_14 {dimension_numbers = #tpu.dot_dimension_numbers<[1], [0], [0], [1], [0, 0, 1, 1], [], []>} : vector<16x32xf32>, vector<32x1xf32>, vector<16x1xf32> -> vector<16x1xf32>
    %14 = arith.addf %10, %13 : vector<16x1xf32>
    %cst_15 = arith.constant dense<0xFF800000> : vector<1xf32>
    %15 = vector.multi_reduction <maximumf>, %14, %cst_15 [0] : vector<16x1xf32> to vector<1xf32>
    %16 = vector.shape_cast %15 : vector<1xf32> to vector<1x1xf32>
    %17 = vector.broadcast %16 : vector<1x1xf32> to vector<16x1xf32>
    %18 = arith.subf %14, %17 : vector<16x1xf32>
    %19 = math.exp %18 : vector<16x1xf32>
    %20 = tpu.iota {dimensions = array<i32: 1>} : vector<2x16xi32>
    %c2_i32 = arith.constant 2 : i32
    %c0_i32 = arith.constant 0 : i32
    %21 = arith.cmpi eq, %c2_i32, %c0_i32 : i32
    %c1_i32 = arith.constant 1 : i32
    %22 = arith.select %21, %c1_i32, %c2_i32 : i32
    %23 = vector.broadcast %22 : i32 to vector<2x16xi32>
    %24 = arith.remsi %20, %23 : vector<2x16xi32>
    %c0_i32_16 = arith.constant 0 : i32
    %25 = vector.broadcast %c0_i32_16 : i32 to vector<2x16xi32>
    %26 = arith.cmpi ne, %24, %25 : vector<2x16xi32>
    %c0_i32_17 = arith.constant 0 : i32
    %27 = vector.broadcast %c0_i32_17 : i32 to vector<2x16xi32>
    %28 = arith.cmpi slt, %24, %27 : vector<2x16xi32>
    %c0_i32_18 = arith.constant 0 : i32
    %29 = arith.cmpi slt, %22, %c0_i32_18 : i32
    %30 = vector.broadcast %29 : i1 to vector<2x16xi1>
    %31 = vector.broadcast %30 : vector<2x16xi1> to vector<2x16xi1>
    %32 = arith.xori %28, %31 : vector<2x16xi1>
    %33 = arith.andi %32, %26 : vector<2x16xi1>
    %34 = vector.broadcast %22 : i32 to vector<2x16xi32>
    %35 = arith.addi %24, %34 : vector<2x16xi32>
    %36 = arith.select %33, %35, %24 : vector<2x16xi1>, vector<2x16xi32>
    %37 = tpu.iota {dimensions = array<i32: 0>} : vector<2x16xi32>
    %38 = arith.cmpi eq, %36, %37 : vector<2x16xi32>
    %39 = arith.extui %38 : vector<2x16xi1> to vector<2x16xi32>
    %40 = arith.sitofp %39 : vector<2x16xi32> to vector<2x16xf32>
    %41 = tpu.iota {dimensions = array<i32: 0>} : vector<16x2xi32>
    %c2_i32_19 = arith.constant 2 : i32
    %c0_i32_20 = arith.constant 0 : i32
    %42 = arith.cmpi eq, %c2_i32_19, %c0_i32_20 : i32
    %c1_i32_21 = arith.constant 1 : i32
    %43 = arith.select %42, %c1_i32_21, %c2_i32_19 : i32
    %44 = vector.broadcast %43 : i32 to vector<16x2xi32>
    %45 = arith.remsi %41, %44 : vector<16x2xi32>
    %c0_i32_22 = arith.constant 0 : i32
    %46 = vector.broadcast %c0_i32_22 : i32 to vector<16x2xi32>
    %47 = arith.cmpi ne, %45, %46 : vector<16x2xi32>
    %c0_i32_23 = arith.constant 0 : i32
    %48 = vector.broadcast %c0_i32_23 : i32 to vector<16x2xi32>
    %49 = arith.cmpi slt, %45, %48 : vector<16x2xi32>
    %c0_i32_24 = arith.constant 0 : i32
    %50 = arith.cmpi slt, %43, %c0_i32_24 : i32
    %51 = vector.broadcast %50 : i1 to vector<16x2xi1>
    %52 = vector.broadcast %51 : vector<16x2xi1> to vector<16x2xi1>
    %53 = arith.xori %49, %52 : vector<16x2xi1>
    %54 = arith.andi %53, %47 : vector<16x2xi1>
    %55 = vector.broadcast %43 : i32 to vector<16x2xi32>
    %56 = arith.addi %45, %55 : vector<16x2xi32>
    %57 = arith.select %54, %56, %45 : vector<16x2xi1>, vector<16x2xi32>
    %58 = tpu.iota {dimensions = array<i32: 1>} : vector<16x2xi32>
    %59 = arith.cmpi eq, %57, %58 : vector<16x2xi32>
    %60 = arith.extui %59 : vector<16x2xi1> to vector<16x2xi32>
    %61 = arith.sitofp %60 : vector<16x2xi32> to vector<16x2xf32>
    %cst_25 = arith.constant dense<0.000000e+00> : vector<2x1xf32>
    %62 = tpu.matmul %40, %19, %cst_25 {dimension_numbers = #tpu.dot_dimension_numbers<[1], [0], [0], [1], [0, 0, 1, 1], [], []>} : vector<2x16xf32>, vector<16x1xf32>, vector<2x1xf32> -> vector<2x1xf32>
    %cst_26 = arith.constant dense<0.000000e+00> : vector<16x1xf32>
    %63 = tpu.matmul %61, %62, %cst_26 {dimension_numbers = #tpu.dot_dimension_numbers<[1], [0], [0], [1], [0, 0, 1, 1], [], []>} : vector<16x2xf32>, vector<2x1xf32>, vector<16x1xf32> -> vector<16x1xf32>
    %64 = arith.divf %19, %63 : vector<16x1xf32>
    %c0_27 = arith.constant 0 : index
    %c0_28 = arith.constant 0 : index
    %c0_29 = arith.constant 0 : index
    %65 = vector.load %arg3[%c0_27, %c0_28, %c0_29] : memref<2x32x32xf32, #tpu.memory_space<vmem>>, vector<1x32x32xf32>
    %66 = vector.shape_cast %65 : vector<1x32x32xf32> to vector<32x32xf32>
    %cst_30 = arith.constant dense<0.000000e+00> : vector<16x32xf32>
    %67 = tpu.matmul %5, %66, %cst_30 {dimension_numbers = #tpu.dot_dimension_numbers<[1], [0], [0], [1], [0, 0, 1, 1], [], []>} : vector<16x32xf32>, vector<32x32xf32>, vector<16x32xf32> -> vector<16x32xf32>
    %c1_31 = arith.constant 1 : index
    %c0_32 = arith.constant 0 : index
    %c0_33 = arith.constant 0 : index
    %68 = vector.load %arg3[%c1_31, %c0_32, %c0_33] : memref<2x32x32xf32, #tpu.memory_space<vmem>>, vector<1x32x32xf32>
    %69 = vector.shape_cast %68 : vector<1x32x32xf32> to vector<32x32xf32>
    %cst_34 = arith.constant dense<0.000000e+00> : vector<16x32xf32>
    %70 = tpu.matmul %7, %69, %cst_34 {dimension_numbers = #tpu.dot_dimension_numbers<[1], [0], [0], [1], [0, 0, 1, 1], [], []>} : vector<16x32xf32>, vector<32x32xf32>, vector<16x32xf32> -> vector<16x32xf32>
    %71 = arith.addf %67, %70 : vector<16x32xf32>
    %72 = math.tanh %71 : vector<16x32xf32>
    %c0_35 = arith.constant 0 : index
    %c0_36 = arith.constant 0 : index
    %73 = vector.load %arg1[%c0_35, %c0_36] : memref<16x32xf32, #tpu.memory_space<vmem>>, vector<16x32xf32>
    %74 = arith.mulf %73, %72 : vector<16x32xf32>
    %75 = vector.broadcast %64 : vector<16x1xf32> to vector<16x32xf32>
    %76 = arith.mulf %74, %75 : vector<16x32xf32>
    %cst_37 = arith.constant dense<0.000000e+00> : vector<2x32xf32>
    %77 = tpu.matmul %40, %76, %cst_37 {dimension_numbers = #tpu.dot_dimension_numbers<[1], [0], [0], [1], [0, 0, 1, 1], [], []>} : vector<2x16xf32>, vector<16x32xf32>, vector<2x32xf32> -> vector<2x32xf32>
    %c0_38 = arith.constant 0 : index
    %c0_39 = arith.constant 0 : index
    %78 = vector.load %arg4[%c0_38, %c0_39] : memref<32x5xf32, #tpu.memory_space<vmem>>, vector<32x5xf32>
    %cst_40 = arith.constant dense<0.000000e+00> : vector<2x5xf32>
    %79 = tpu.matmul %77, %78, %cst_40 {dimension_numbers = #tpu.dot_dimension_numbers<[1], [0], [0], [1], [0, 0, 1, 1], [], []>} : vector<2x32xf32>, vector<32x5xf32>, vector<2x5xf32> -> vector<2x5xf32>
    %c0_41 = arith.constant 0 : index
    %c0_42 = arith.constant 0 : index
    %80 = vector.load %arg5[%c0_41, %c0_42] : memref<2x5xf32, #tpu.memory_space<vmem>>, vector<2x5xf32>
    tpu.vector_store %arg5[%c0_41, %c0_42], %79 {strides = array<i32>} : memref<2x5xf32, #tpu.memory_space<vmem>>, vector<2x5xf32>,
    return
  }
}

</mosaic_0001>

<llo_original>
// kernel: retain_ex_forward.4
$region0: #{retain_ex_forward.4}
  #allocation0 [shape = 'u32[]', space=smem, size = 0x4, offset = 0x4, fixed_abs, tag = 'smem constant byte address 0x4 - core index']
  #allocation1 [shape = 'u32[144,128]{1,0:T(1,128)}', space=vmem, size = 0x12000, scoped, tag = 'internal scratch']
  %s0 = inlined_call_operand.vmem [shape: s32[16,4], index: 0, kind: input, shape index: {}]
  %s1 = inlined_call_operand.vmem [shape: f32[16,4], index: 1, kind: input, shape index: {}]
  %s2 = inlined_call_operand.vmem [shape: f32[17,64], index: 2, kind: input, shape index: {}]
  %s3 = inlined_call_operand.vmem [shape: f32[16,32], index: 3, kind: output, shape index: {0}]
  %s4 = inlined_call_operand.vmem [shape: f32[16,32], index: 4, kind: output, shape index: {1}]
  %5 = xla_tuple %s3, %s4
  %s6 = sld [smem:[#allocation0]]
  $region53: #{retain_ex_forward.4} parent=0
    _
  %s8 = ssub.s32 1, %s6
  %s9 = scalar_select 0, %s8, %s6
  loop: start=0, step=1, limit=4
  $region2: #{retain_ex_forward.4} parent=0 // loop_pre_header
    _
  $region3: #{retain_ex_forward.4} parent=0 // loop_header
    %s11 = sphi 0, %s15
    %p12 = scmp.ge.s32.totalorder %s11, 4
    %s21 = sphi 0, %s23
    %s24 = sphi 0, %s21
    %s25 = sphi 0, %s24
    %s41 = sphi 0, %s25
    %s47 = sphi 0, %s49
    %s50 = sphi 0, %s47
    %s51 = sphi 0, %s50
    %s67 = sphi 0, %s51
    %s71 = sphi 0, %s71
    %s73 = sphi 0, %s71
    %s74 = sphi 0, %s73
    %s88 = sphi 0, %s74
    %s94 = sphi 0, %s96
    %s97 = sphi 0, %s94
    %s98 = sphi 0, %s97
    %s114 = sphi 0, %s98
    %s120 = sphi 0, %s122
    %s123 = sphi 0, %s120
    %s124 = sphi 0, %s123
    %s140 = sphi 0, %s124
  $region4: #{retain_ex_forward.4} parent=0 // loop_header_branch
    %14 = sbr.rel (%p12) target = $region8
  $region5: #{retain_ex_forward.4} parent=0 // loop_body
    %s16 = ssub.s32 %s11, 1
    %s17 = ssub.s32 %s11, 2
    %s18 = sadd.s32 %s11, 1
    %s19 = ssub.s32 %s11, %s18
    %p20 = scmp.eq.s32.totalorder %s19, 0
    %s22 = sadd.s32 %s21, 1
    %s23 = scalar_select %p20, %s21, %s22
    %p26 = pneg %p20
    %p27 = scmp.eq.s32.totalorder %s11, 1
    %p28 = por %p26, %p27
    %p29 = scmp.ne.s32.totalorder %s21, %s24
    %p30 = scmp.eq.s32.totalorder %s11, 0
    %p31 = por %p29, %p30
    %p32 = scmp.ne.s32.totalorder %s21, %s24
    %p33 = scmp.eq.s32.totalorder %s16, 1
    %p34 = por %p32, %p33
    %p35 = scmp.ne.s32.totalorder %s24, %s25
    %p36 = scmp.eq.s32.totalorder %s16, 0
    %p37 = por %p35, %p36
    %p38 = scmp.ne.s32.totalorder %s24, %s25
    %p39 = scmp.eq.s32.totalorder %s17, 1
    %p40 = por %p38, %p39
    %p42 = scmp.ne.s32.totalorder %s25, %s41
    %p43 = scmp.eq.s32.totalorder %s17, 0
    %p44 = por %p42, %p43
    %s45 = ssub.s32 %s11, %s18
    %p46 = scmp.eq.s32.totalorder %s45, 0
    %s48 = sadd.s32 %s47, 1
    %s49 = scalar_select %p46, %s47, %s48
    %p52 = pneg %p46
    %p53 = scmp.eq.s32.totalorder %s11, 1
    %p54 = por %p52, %p53
    %p55 = scmp.ne.s32.totalorder %s47, %s50
    %p56 = scmp.eq.s32.totalorder %s11, 0
    %p57 = por %p55, %p56
    %p58 = scmp.ne.s32.totalorder %s47, %s50
    %p59 = scmp.eq.s32.totalorder %s16, 1
    %p60 = por %p58, %p59
    %p61 = scmp.ne.s32.totalorder %s50, %s51
    %p62 = scmp.eq.s32.totalorder %s16, 0
    %p63 = por %p61, %p62
    %p64 = scmp.ne.s32.totalorder %s50, %s51
    %p65 = scmp.eq.s32.totalorder %s17, 1
    %p66 = por %p64, %p65
    %p68 = scmp.ne.s32.totalorder %s51, %s67
    %p69 = scmp.eq.s32.totalorder %s17, 0
    %p70 = por %p68, %p69
    %s72 = sadd.s32 %s71, 1
    %p75 = scmp.eq.s32.totalorder %s11, 1
    %p76 = scmp.ne.s32.totalorder %s71, %s73
    %p77 = scmp.eq.s32.totalorder %s11, 0
    %p78 = por %p76, %p77
    %p79 = scmp.ne.s32.totalorder %s71, %s73
    %p80 = scmp.eq.s32.totalorder %s16, 1
    %p81 = por %p79, %p80
    %p82 = scmp.ne.s32.totalorder %s73, %s74
    %p83 = scmp.eq.s32.totalorder %s16, 0
    %p84 = por %p82, %p83
    %p85 = scmp.ne.s32.totalorder %s73, %s74
    %p86 = scmp.eq.s32.totalorder %s17, 1
    %p87 = por %p85, %p86
    %p89 = scmp.ne.s32.totalorder %s74, %s88
    %p90 = scmp.eq.s32.totalorder %s17, 0
    %p91 = por %p89, %p90
    %s92 = ssub.s32 %s11, %s18
    %p93 = scmp.eq.s32.totalorder %s92, 0
    %s95 = sadd.s32 %s94, 1
    %s96 = scalar_select %p93, %s94, %s95
    %p99 = pneg %p93
    %p100 = scmp.eq.s32.totalorder %s11, 1
    %p101 = por %p99, %p100
    %p102 = scmp.ne.s32.totalorder %s94, %s97
    %p103 = scmp.eq.s32.totalorder %s11, 0
    %p104 = por %p102, %p103
    %p105 = scmp.ne.s32.totalorder %s94, %s97
    %p106 = scmp.eq.s32.totalorder %s16, 1
    %p107 = por %p105, %p106
    %p108 = scmp.ne.s32.totalorder %s97, %s98
    %p109 = scmp.eq.s32.totalorder %s16, 0
    %p110 = por %p108, %p109
    %p111 = scmp.ne.s32.totalorder %s97, %s98
    %p112 = scmp.eq.s32.totalorder %s17, 1
    %p113 = por %p111, %p112
    %p115 = scmp.ne.s32.totalorder %s98, %s114
    %p116 = scmp.eq.s32.totalorder %s17, 0
    %p117 = por %p115, %p116
    %s118 = ssub.s32 %s11, %s18
    %p119 = scmp.eq.s32.totalorder %s118, 0
    %s121 = sadd.s32 %s120, 1
    %s122 = scalar_select %p119, %s120, %s121
    %p125 = pneg %p119
    %p126 = scmp.eq.s32.totalorder %s11, 1
    %p127 = por %p125, %p126
    %p128 = scmp.ne.s32.totalorder %s120, %s123
    %p129 = scmp.eq.s32.totalorder %s11, 0
    %p130 = por %p128, %p129
    %p131 = scmp.ne.s32.totalorder %s120, %s123
    %p132 = scmp.eq.s32.totalorder %s16, 1
    %p133 = por %p131, %p132
    %p134 = scmp.ne.s32.totalorder %s123, %s124
    %p135 = scmp.eq.s32.totalorder %s16, 0
    %p136 = por %p134, %p135
    %p137 = scmp.ne.s32.totalorder %s123, %s124
    %p138 = scmp.eq.s32.totalorder %s17, 1
    %p139 = por %p137, %p138
    %p141 = scmp.ne.s32.totalorder %s124, %s140
    %p142 = scmp.eq.s32.totalorder %s17, 0
    %p143 = por %p141, %p142
    %p144 = scmp.le.s32.totalorder 1, %s11
    %p145 = scmp.lt.s32.totalorder %s11, 3
    %p146 = pnand %p144, %p145
    %p147 = pneg %p146
    // Predicated region
    $region9: #{retain_ex_forward.4} parent=5 // pred_check
      _
    $region10: #{retain_ex_forward.4} parent=5 // pred_check_branch
      %149 = sbr.rel (%p146) target = $region12
    $region11: #{retain_ex_forward.4} parent=5 // pred_region
      %s150 = ssub.s32 %s11, 1
      // Predicated region
      $region13: #{retain_ex_forward.4} parent=11 // pred_check
        %p151 = pneg %p84
      $region14: #{retain_ex_forward.4} parent=11 // pred_check_branch
        %153 = sbr.rel (%p151) target = $region16
      $region15: #{retain_ex_forward.4} parent=11 // pred_region
        _
      $region16: #{retain_ex_forward.4} parent=11 // pred_fallthru
        _
    $region12: #{retain_ex_forward.4} parent=5 // pred_fallthru
      _
    %p154 = scmp.lt.s32.totalorder %s11, 2
    // Predicated region
    $region17: #{retain_ex_forward.4} parent=5 // pred_check
      %p155 = pneg %p154
    $region18: #{retain_ex_forward.4} parent=5 // pred_check_branch
      %157 = sbr.rel (%p155) target = $region20
    $region19: #{retain_ex_forward.4} parent=5 // pred_region
      // Predicated region
      $region21: #{retain_ex_forward.4} parent=19 // pred_check
        %p158 = pneg %p31
      $region22: #{retain_ex_forward.4} parent=19 // pred_check_branch
        %160 = sbr.rel (%p158) target = $region24
      $region23: #{retain_ex_forward.4} parent=19 // pred_region
        %p161 = scmp.lt.s32.totalorder %s11, 1
        %s162 = scalar_select %p161, %s11, 1
        %s163 = smul.addr %s162, 8
        %s164 = scalar_lea.vmem %s0, %s163
      $region24: #{retain_ex_forward.4} parent=19 // pred_fallthru
        _
      // Predicated region
      $region25: #{retain_ex_forward.4} parent=19 // pred_check
        %p165 = pneg %p57
      $region26: #{retain_ex_forward.4} parent=19 // pred_check_branch
        %167 = sbr.rel (%p165) target = $region28
      $region27: #{retain_ex_forward.4} parent=19 // pred_region
        %p168 = scmp.lt.s32.totalorder %s11, 1
        %s169 = scalar_select %p168, %s11, 1
        %s170 = smul.addr %s169, 8
        %s171 = scalar_lea.vmem %s1, %s170
      $region28: #{retain_ex_forward.4} parent=19 // pred_fallthru
        _
    $region20: #{retain_ex_forward.4} parent=5 // pred_fallthru
      _
    %p172 = scmp.le.s32.totalorder 1, %s11
    %p173 = scmp.lt.s32.totalorder %s11, 3
    %p174 = pnand %p172, %p173
    %p175 = pneg %p174
    // Predicated region
    $region29: #{retain_ex_forward.4} parent=5 // pred_check
      _
    $region30: #{retain_ex_forward.4} parent=5 // pred_check_branch
      %177 = sbr.rel (%p174) target = $region32
    $region31: #{retain_ex_forward.4} parent=5 // pred_region
      %s178 = ssub.s32 %s11, 1
      %p179 = scmp.lt.s32.totalorder %s16, 1
      %s180 = scalar_select %p179, %s16, 1
      %s181 = smul.addr %s180, 8
      %s182 = scalar_lea.vmem %s0, %s181
      %p183 = pneg %p37
      %p184 = pneg %p34
      %p185 = scmp.lt.s32.totalorder %s16, 1
      %s186 = scalar_select %p185, %s16, 1
      %s187 = smul.addr %s186, 8
      %s188 = scalar_lea.vmem %s1, %s187
      %p189 = pneg %p63
      %p190 = pneg %p60
      %p191 = pneg %p84
      %p192 = pneg %p81
      %p193 = pneg %p110
      %p194 = pneg %p107
      %p195 = scmp.lt.s32.totalorder %s16, 1
      %s196 = scalar_select %p195, %s16, 1
      %s197 = smul.addr %s196, 8
      %s198 = scalar_lea.vmem %s3, %s197
      %p199 = pneg %p136
      %p200 = pneg %p133
      %p201 = scmp.lt.s32.totalorder %s16, 1
      %s202 = scalar_select %p201, %s16, 1
      %s203 = smul.addr %s202, 8
      %s204 = scalar_lea.vmem %s4, %s203
      %p205 = scmp.lt.s32.totalorder %s16, 1
      %s206 = scalar_select %p205, %s16, 1
      %s207 = smul.addr %s206, 8
      %s208 = scalar_lea.vmem %s0, %s207
      %p209 = scmp.lt.s32.totalorder %s16, 1
      %s210 = scalar_select %p209, %s16, 1
      %s211 = smul.addr %s210, 8
      %s212 = scalar_lea.vmem %s1, %s211
      %p213 = scmp.lt.s32.totalorder %s16, 1
      %s214 = scalar_select %p213, %s16, 1
      %s215 = smul.addr %s214, 8
      %s216 = scalar_lea.vmem %s3, %s215
      %p217 = scmp.lt.s32.totalorder %s16, 1
      %s218 = scalar_select %p217, %s16, 1
      %s219 = smul.addr %s218, 8
      %s220 = scalar_lea.vmem %s4, %s219
      %v221 = vld [vmem:[%s208] sm:$0xff]
      %v222 = vld [vmem:[%s212] sm:$0xff]
      %v223 = vlaneseq
      %v224 = vand.u32 %v223, 127
      %225 = vset.pattern.permute.xlu0 0
      %226 = vperm.xlu0 %225, %v221
      %v227 = vpop.permute.xlu0 %226
      %vm228 = vcmp.eq.s32.totalorder %v224, %v227
      %230 = vset.pattern.permute.xlu0 0
      %231 = vperm.xlu0 %230, %v222
      %v232 = vpop.permute.xlu0 %231
      %v234 = vsel %vm228, %v232, 0.0
      %v235 = vadd.f32 %v234, 0.0
      %236 = vset.pattern.permute.xlu0 1
      %237 = vperm.xlu0 %236, %v221
      %v238 = vpop.permute.xlu0 %237
      %vm239 = vcmp.eq.s32.totalorder %v224, %v238
      %240 = vset.pattern.permute.xlu0 1
      %241 = vperm.xlu0 %240, %v222
      %v242 = vpop.permute.xlu0 %241
      %v244 = vsel %vm239, %v242, 0.0
      %v245 = vadd.f32 %v235, %v244
      %246 = vset.pattern.permute.xlu0 2
      %247 = vperm.xlu0 %246, %v221
      %v248 = vpop.permute.xlu0 %247
      %vm249 = vcmp.eq.s32.totalorder %v224, %v248
      %250 = vset.pattern.permute.xlu0 2
      %251 = vperm.xlu0 %250, %v222
      %v252 = vpop.permute.xlu0 %251
      %v254 = vsel %vm249, %v252, 0.0
      %v255 = vadd.f32 %v245, %v254
      %256 = vset.pattern.permute.xlu0 3
      %257 = vperm.xlu0 %256, %v221
      %v258 = vpop.permute.xlu0 %257
      %vm259 = vcmp.eq.s32.totalorder %v224, %v258
      %260 = vset.pattern.permute.xlu0 3
      %261 = vperm.xlu0 %260, %v222
      %v262 = vpop.permute.xlu0 %261
      %v264 = vsel %vm259, %v262, 0.0
      %v265 = vadd.f32 %v255, %v264
      %v266 = vld [vmem:[%s2] sm:$0xff]
      %v267 = vld [vmem:[%s2 + $0x8] sm:$0xff]
      %v268 = vld [vmem:[%s2 + $0x10] sm:$0x1]
      %vm269 = vcmask 138240
      %v271 = vsel %vm269, %v265, 0
      %vm273 = vcmask 1040384
      %v275 = vsel %vm273, %v268, 0
      %277 = vmatprep.subr.mxu0 0.0
      %278 = vmatpush1.msra.mxu0 0.0
      %279 = vmatprep.subr.mxu0 0.0
      %280 = vmatpush1.msra.mxu0 0.0
      %281 = vmatprep.subr.mxu0 0.0
      %282 = vmatpush1.msra.mxu0 0.0
      %283 = vmatprep.subr.mxu0 0.0
      %284 = vmatpush1.msra.mxu0 0.0
      %285 = vmatprep.subr.mxu0 0.0
      %286 = vmatpush1.msra.mxu0 0.0
      %287 = vmatprep.subr.mxu0 0.0
      %288 = vmatpush1.msra.mxu0 0.0
      %289 = vmatprep.subr.mxu0 0.0
      %290 = vmatpush1.msra.mxu0 0.0
      %291 = vmatprep.subr.mxu0 0.0
      %292 = vmatpush1.msra.mxu0 0.0
      %293 = vmatprep.subr.mxu0 0.0
      %294 = vmatpush1.msra.mxu0 0.0
      %295 = vmatprep.subr.mxu0 0.0
      %296 = vmatpush1.msra.mxu0 0.0
      %297 = vmatprep.subr.mxu0 0.0
      %298 = vmatpush1.msra.mxu0 0.0
      %299 = vmatprep.subr.mxu0 0.0
      %300 = vmatpush1.msra.mxu0 0.0
      %301 = vmatprep.subr.mxu0 0.0
      %302 = vmatpush1.msra.mxu0 0.0
      %303 = vmatprep.subr.mxu0 0.0
      %304 = vmatpush1.msra.mxu0 %v275
      %305 = vmatprep.subr.mxu0 0.0
      %306 = vmatpush1.msra.mxu0 %v267
      %307 = vmatprep.subr.mxu0 0.0
      %308 = vmatpush1.msra.mxu0 %v266
      %309 = vmatprep.subr.mxu0 0.0
      %310 = vmatpush2.msra.mxu0 0.0
      %311 = vmatprep.subr.mxu0 0.0
      %312 = vmatpush2.msra.mxu0 0.0
      %313 = vmatprep.subr.mxu0 0.0
      %314 = vmatpush2.msra.mxu0 0.0
      %315 = vmatprep.subr.mxu0 0.0
      %316 = vmatpush2.msra.mxu0 0.0
      %317 = vmatprep.subr.mxu0 0.0
      %318 = vmatpush2.msra.mxu0 0.0
      %319 = vmatprep.subr.mxu0 0.0
      %320 = vmatpush2.msra.mxu0 0.0
      %321 = vmatprep.subr.mxu0 0.0
      %322 = vmatpush2.msra.mxu0 0.0
      %323 = vmatprep.subr.mxu0 0.0
      %324 = vmatpush2.msra.mxu0 0.0
      %325 = vmatprep.subr.mxu0 0.0
      %326 = vmatpush2.msra.mxu0 0.0
      %327 = vmatprep.subr.mxu0 0.0
      %328 = vmatpush2.msra.mxu0 0.0
      %329 = vmatprep.subr.mxu0 0.0
      %330 = vmatpush2.msra.mxu0 0.0
      %331 = vmatprep.subr.mxu0 0.0
      %332 = vmatpush2.msra.mxu0 0.0
      %333 = vmatprep.subr.mxu0 0.0
      %334 = vmatpush2.msra.mxu0 0.0
      %335 = vmatprep.subr.mxu0 0.0
      %336 = vmatpush2.msra.mxu0 0.0
      %337 = vmatprep.subr.mxu0 0.0
      %338 = vmatpush2.msra.mxu0 0.0
      %339 = vmatprep.subr.mxu0 0.0
      %340 = vmatpush2.msra.mxu0 0.0
      %341 = vmatprep.mubr.f32.mxu0 0.0
      %342 = vmatmul.mubr.f32.gmra.mxu0 %v271
      %v343 = vpop.f32.mrf.mxu0
      %v344 = vadd.f32 0.0, %v343
      %v345 = vpop.f32.mrf.mxu0
      %346 = vdwg.mxu0
      %vm347 = vcmask 261120
      %348 = vst.msk [vmem:[%s216] sm:$0xff] %vm347, %v344
      %350 = vrot.lane.b32.xlu0 %v344, 96
      %v351 = vpop.permute.xlu0 %350
      %353 = vst.msk [vmem:[%s220] sm:$0xff] %vm347, %v351
      %p354 = scmp.lt.s32.totalorder %s16, 1
      %s355 = scalar_select %p354, %s16, 1
      %s356 = smul.addr %s355, 8
      %s357 = scalar_lea.vmem %s3, %s356
      %p358 = scmp.lt.s32.totalorder %s16, 1
      %s359 = scalar_select %p358, %s16, 1
      %s360 = smul.addr %s359, 8
      %s361 = scalar_lea.vmem %s4, %s360
      // Predicated region
      $region33: #{retain_ex_forward.4} parent=31 // pred_check
        %p362 = pneg %p107
      $region34: #{retain_ex_forward.4} parent=31 // pred_check_branch
        %364 = sbr.rel (%p362) target = $region36
      $region35: #{retain_ex_forward.4} parent=31 // pred_region
        _
      $region36: #{retain_ex_forward.4} parent=31 // pred_fallthru
        _
      // Predicated region
      $region37: #{retain_ex_forward.4} parent=31 // pred_check
        %p365 = pneg %p133
      $region38: #{retain_ex_forward.4} parent=31 // pred_check_branch
        %367 = sbr.rel (%p365) target = $region40
      $region39: #{retain_ex_forward.4} parent=31 // pred_region
        _
      $region40: #{retain_ex_forward.4} parent=31 // pred_fallthru
        _
    $region32: #{retain_ex_forward.4} parent=5 // pred_fallthru
      _
    %p368 = scmp.le.s32.totalorder 2, %s11
    // Predicated region
    $region41: #{retain_ex_forward.4} parent=5 // pred_check
      %p369 = pneg %p368
    $region42: #{retain_ex_forward.4} parent=5 // pred_check_branch
      %371 = sbr.rel (%p369) target = $region44
    $region43: #{retain_ex_forward.4} parent=5 // pred_region
      %s372 = ssub.s32 %s11, 2
      // Predicated region
      $region45: #{retain_ex_forward.4} parent=43 // pred_check
        %p373 = pneg %p113
      $region46: #{retain_ex_forward.4} parent=43 // pred_check_branch
        %375 = sbr.rel (%p373) target = $region48
      $region47: #{retain_ex_forward.4} parent=43 // pred_region
        %p376 = scmp.lt.s32.totalorder %s17, 1
        %s377 = scalar_select %p376, %s17, 1
        %s378 = smul.addr %s377, 8
        %s379 = scalar_lea.vmem %s3, %s378
      $region48: #{retain_ex_forward.4} parent=43 // pred_fallthru
        _
      // Predicated region
      $region49: #{retain_ex_forward.4} parent=43 // pred_check
        %p380 = pneg %p139
      $region50: #{retain_ex_forward.4} parent=43 // pred_check_branch
        %382 = sbr.rel (%p380) target = $region52
      $region51: #{retain_ex_forward.4} parent=43 // pred_region
        %p383 = scmp.lt.s32.totalorder %s17, 1
        %s384 = scalar_select %p383, %s17, 1
        %s385 = smul.addr %s384, 8
        %s386 = scalar_lea.vmem %s4, %s385
      $region52: #{retain_ex_forward.4} parent=43 // pred_fallthru
        _
    $region44: #{retain_ex_forward.4} parent=5 // pred_fallthru
      _
  $region6: #{retain_ex_forward.4} parent=0 // loop_footer
    %s15 = sadd.s32 1, %s11
  $region7: #{retain_ex_forward.4} parent=0 // loop_footer_branch
    %10 = sbr.rel target = $region3
  $region8: #{retain_ex_forward.4} parent=0 // loop_exit
    _

// kernel: retain_ex_forward.5
$region0: #{retain_ex_forward.5}
  #allocation0 [shape = 'u32[]', space=smem, size = 0x4, offset = 0x4, fixed_abs, tag = 'smem constant byte address 0x4 - core index']
  #allocation1 [shape = 'u32[144,128]{1,0:T(1,128)}', space=vmem, size = 0x12000, scoped, tag = 'internal scratch']
  %s0 = inlined_call_operand.vmem [shape: f32[16,32], index: 0, kind: input, shape index: {}]
  %s1 = inlined_call_operand.vmem [shape: f32[16,3], index: 1, kind: input, shape index: {}]
  %s2 = inlined_call_operand.vmem [shape: f32[4,32,128], index: 2, kind: input, shape index: {}]
  %s3 = inlined_call_operand.vmem [shape: f32[4,3,128], index: 3, kind: input, shape index: {}]
  %s4 = inlined_call_operand.vmem [shape: f32[4,1,128], index: 4, kind: input, shape index: {}]
  %s5 = inlined_call_operand.vmem [shape: f32[4,16,128], index: 5, kind: output, shape index: {}]
  %s6 = sld [smem:[#allocation0]]
  $region53: #{retain_ex_forward.5} parent=0
    _
  %s8 = ssub.s32 1, %s6
  %s9 = scalar_select 0, %s8, %s6
  loop: start=0, step=1, limit=10
  $region2: #{retain_ex_forward.5} parent=0 // loop_pre_header
    _
  $region3: #{retain_ex_forward.5} parent=0 // loop_header
    %s11 = sphi 0, %s15
    %p12 = scmp.ge.s32.totalorder %s11, 10
    %s18 = sphi 0, %s30
    %s19 = sphi 0, %s26
    %s20 = sphi 0, %s18
    %s21 = sphi 0, %s19
    %s22 = sphi 0, %s20
    %s23 = sphi 0, %s21
    %s33 = sphi 0, %s35
    %s36 = sphi 0, %s33
    %s37 = sphi 0, %s36
    %s53 = sphi 0, %s37
    %s59 = sphi 0, %s61
    %s62 = sphi 0, %s59
    %s63 = sphi 0, %s62
    %s79 = sphi 0, %s63
    %s85 = sphi 0, %s87
    %s88 = sphi 0, %s85
    %s89 = sphi 0, %s88
    %s105 = sphi 0, %s89
    %s111 = sphi 0, %s113
    %s114 = sphi 0, %s111
    %s115 = sphi 0, %s114
    %s131 = sphi 0, %s115
    %s137 = sphi 0, %s139
    %s140 = sphi 0, %s137
    %s141 = sphi 0, %s140
    %s157 = sphi 0, %s141
    %s165 = sphi 0, %s167
    %s168 = sphi 0, %s165
    %s169 = sphi 0, %s168
    %s185 = sphi 0, %s169
  $region4: #{retain_ex_forward.5} parent=0 // loop_header_branch
    %14 = sbr.rel (%p12) target = $region8
  $region5: #{retain_ex_forward.5} parent=0 // loop_body
    %s16 = ssub.s32 %s11, 1
    %s17 = ssub.s32 %s11, 2
    %s24 = sadd.s32 1, %s19
    %p25 = scmp.ge.s32.totalorder %s24, 2
    %s26 = scalar_select %p25, 0, %s24
    %s27 = sadd.s32 1, %s18
    %s28 = scalar_select %p25, %s27, %s18
    %p29 = scmp.ge.s32.totalorder %s28, 4
    %s30 = scalar_select %p29, 0, %s28
    %s31 = ssub.s32 %s19, %s26
    %p32 = scmp.eq.s32.totalorder %s31, 0
    %s34 = sadd.s32 %s33, 1
    %s35 = scalar_select %p32, %s33, %s34
    %p38 = pneg %p32
    %p39 = scmp.eq.s32.totalorder %s11, 7
    %p40 = por %p38, %p39
    %p41 = scmp.ne.s32.totalorder %s33, %s36
    %p42 = scmp.eq.s32.totalorder %s11, 0
    %p43 = por %p41, %p42
    %p44 = scmp.ne.s32.totalorder %s33, %s36
    %p45 = scmp.eq.s32.totalorder %s16, 7
    %p46 = por %p44, %p45
    %p47 = scmp.ne.s32.totalorder %s36, %s37
    %p48 = scmp.eq.s32.totalorder %s16, 0
    %p49 = por %p47, %p48
    %p50 = scmp.ne.s32.totalorder %s36, %s37
    %p51 = scmp.eq.s32.totalorder %s17, 7
    %p52 = por %p50, %p51
    %p54 = scmp.ne.s32.totalorder %s37, %s53
    %p55 = scmp.eq.s32.totalorder %s17, 0
    %p56 = por %p54, %p55
    %s57 = ssub.s32 %s19, %s26
    %p58 = scmp.eq.s32.totalorder %s57, 0
    %s60 = sadd.s32 %s59, 1
    %s61 = scalar_select %p58, %s59, %s60
    %p64 = pneg %p58
    %p65 = scmp.eq.s32.totalorder %s11, 7
    %p66 = por %p64, %p65
    %p67 = scmp.ne.s32.totalorder %s59, %s62
    %p68 = scmp.eq.s32.totalorder %s11, 0
    %p69 = por %p67, %p68
    %p70 = scmp.ne.s32.totalorder %s59, %s62
    %p71 = scmp.eq.s32.totalorder %s16, 7
    %p72 = por %p70, %p71
    %p73 = scmp.ne.s32.totalorder %s62, %s63
    %p74 = scmp.eq.s32.totalorder %s16, 0
    %p75 = por %p73, %p74
    %p76 = scmp.ne.s32.totalorder %s62, %s63
    %p77 = scmp.eq.s32.totalorder %s17, 7
    %p78 = por %p76, %p77
    %p80 = scmp.ne.s32.totalorder %s63, %s79
    %p81 = scmp.eq.s32.totalorder %s17, 0
    %p82 = por %p80, %p81
    %s83 = ssub.s32 %s18, %s30
    %p84 = scmp.eq.s32.totalorder %s83, 0
    %s86 = sadd.s32 %s85, 1
    %s87 = scalar_select %p84, %s85, %s86
    %p90 = pneg %p84
    %p91 = scmp.eq.s32.totalorder %s11, 7
    %p92 = por %p90, %p91
    %p93 = scmp.ne.s32.totalorder %s85, %s88
    %p94 = scmp.eq.s32.totalorder %s11, 0
    %p95 = por %p93, %p94
    %p96 = scmp.ne.s32.totalorder %s85, %s88
    %p97 = scmp.eq.s32.totalorder %s16, 7
    %p98 = por %p96, %p97
    %p99 = scmp.ne.s32.totalorder %s88, %s89
    %p100 = scmp.eq.s32.totalorder %s16, 0
    %p101 = por %p99, %p100
    %p102 = scmp.ne.s32.totalorder %s88, %s89
    %p103 = scmp.eq.s32.totalorder %s17, 7
    %p104 = por %p102, %p103
    %p106 = scmp.ne.s32.totalorder %s89, %s105
    %p107 = scmp.eq.s32.totalorder %s17, 0
    %p108 = por %p106, %p107
    %s109 = ssub.s32 %s18, %s30
    %p110 = scmp.eq.s32.totalorder %s109, 0
    %s112 = sadd.s32 %s111, 1
    %s113 = scalar_select %p110, %s111, %s112
    %p116 = pneg %p110
    %p117 = scmp.eq.s32.totalorder %s11, 7
    %p118 = por %p116, %p117
    %p119 = scmp.ne.s32.totalorder %s111, %s114
    %p120 = scmp.eq.s32.totalorder %s11, 0
    %p121 = por %p119, %p120
    %p122 = scmp.ne.s32.totalorder %s111, %s114
    %p123 = scmp.eq.s32.totalorder %s16, 7
    %p124 = por %p122, %p123
    %p125 = scmp.ne.s32.totalorder %s114, %s115
    %p126 = scmp.eq.s32.totalorder %s16, 0
    %p127 = por %p125, %p126
    %p128 = scmp.ne.s32.totalorder %s114, %s115
    %p129 = scmp.eq.s32.totalorder %s17, 7
    %p130 = por %p128, %p129
    %p132 = scmp.ne.s32.totalorder %s115, %s131
    %p133 = scmp.eq.s32.totalorder %s17, 0
    %p134 = por %p132, %p133
    %s135 = ssub.s32 %s18, %s30
    %p136 = scmp.eq.s32.totalorder %s135, 0
    %s138 = sadd.s32 %s137, 1
    %s139 = scalar_select %p136, %s137, %s138
    %p142 = pneg %p136
    %p143 = scmp.eq.s32.totalorder %s11, 7
    %p144 = por %p142, %p143
    %p145 = scmp.ne.s32.totalorder %s137, %s140
    %p146 = scmp.eq.s32.totalorder %s11, 0
    %p147 = por %p145, %p146
    %p148 = scmp.ne.s32.totalorder %s137, %s140
    %p149 = scmp.eq.s32.totalorder %s16, 7
    %p150 = por %p148, %p149
    %p151 = scmp.ne.s32.totalorder %s140, %s141
    %p152 = scmp.eq.s32.totalorder %s16, 0
    %p153 = por %p151, %p152
    %p154 = scmp.ne.s32.totalorder %s140, %s141
    %p155 = scmp.eq.s32.totalorder %s17, 7
    %p156 = por %p154, %p155
    %p158 = scmp.ne.s32.totalorder %s141, %s157
    %p159 = scmp.eq.s32.totalorder %s17, 0
    %p160 = por %p158, %p159
    %s161 = ssub.s32 %s18, %s30
    %s162 = ssub.s32 %s19, %s26
    %s163 = sor.u32 %s161, %s162
    %p164 = scmp.eq.s32.totalorder %s163, 0
    %s166 = sadd.s32 %s165, 1
    %s167 = scalar_select %p164, %s165, %s166
    %p170 = pneg %p164
    %p171 = scmp.eq.s32.totalorder %s11, 7
    %p172 = por %p170, %p171
    %p173 = scmp.ne.s32.totalorder %s165, %s168
    %p174 = scmp.eq.s32.totalorder %s11, 0
    %p175 = por %p173, %p174
    %p176 = scmp.ne.s32.totalorder %s165, %s168
    %p177 = scmp.eq.s32.totalorder %s16, 7
    %p178 = por %p176, %p177
    %p179 = scmp.ne.s32.totalorder %s168, %s169
    %p180 = scmp.eq.s32.totalorder %s16, 0
    %p181 = por %p179, %p180
    %p182 = scmp.ne.s32.totalorder %s168, %s169
    %p183 = scmp.eq.s32.totalorder %s17, 7
    %p184 = por %p182, %p183
    %p186 = scmp.ne.s32.totalorder %s169, %s185
    %p187 = scmp.eq.s32.totalorder %s17, 0
    %p188 = por %p186, %p187
    %p189 = scmp.le.s32.totalorder 1, %s11
    %p190 = scmp.lt.s32.totalorder %s11, 9
    %p191 = pnand %p189, %p190
    %p192 = pneg %p191
    // Predicated region
    $region9: #{retain_ex_forward.5} parent=5 // pred_check
      _
    $region10: #{retain_ex_forward.5} parent=5 // pred_check_branch
      %194 = sbr.rel (%p191) target = $region12
    $region11: #{retain_ex_forward.5} parent=5 // pred_region
      %s195 = ssub.s32 %s11, 1
    $region12: #{retain_ex_forward.5} parent=5 // pred_fallthru
      _
    %p196 = scmp.lt.s32.totalorder %s11, 8
    // Predicated region
    $region13: #{retain_ex_forward.5} parent=5 // pred_check
      %p197 = pneg %p196
    $region14: #{retain_ex_forward.5} parent=5 // pred_check_branch
      %199 = sbr.rel (%p197) target = $region16
    $region15: #{retain_ex_forward.5} parent=5 // pred_region
      // Predicated region
      $region17: #{retain_ex_forward.5} parent=15 // pred_check
        %p200 = pneg %p43
      $region18: #{retain_ex_forward.5} parent=15 // pred_check_branch
        %202 = sbr.rel (%p200) target = $region20
      $region19: #{retain_ex_forward.5} parent=15 // pred_region
        %p203 = scmp.lt.s32.totalorder %s19, 1
        %s204 = scalar_select %p203, %s19, 1
        %s205 = smul.addr %s204, 8
        %s206 = scalar_lea.vmem %s0, %s205
      $region20: #{retain_ex_forward.5} parent=15 // pred_fallthru
        _
      // Predicated region
      $region21: #{retain_ex_forward.5} parent=15 // pred_check
        %p207 = pneg %p69
      $region22: #{retain_ex_forward.5} parent=15 // pred_check_branch
        %209 = sbr.rel (%p207) target = $region24
      $region23: #{retain_ex_forward.5} parent=15 // pred_region
        %p210 = scmp.lt.s32.totalorder %s19, 1
        %s211 = scalar_select %p210, %s19, 1
        %s212 = smul.addr %s211, 8
        %s213 = scalar_lea.vmem %s1, %s212
      $region24: #{retain_ex_forward.5} parent=15 // pred_fallthru
        _
      // Predicated region
      $region25: #{retain_ex_forward.5} parent=15 // pred_check
        %p214 = pneg %p95
      $region26: #{retain_ex_forward.5} parent=15 // pred_check_branch
        %216 = sbr.rel (%p214) target = $region28
      $region27: #{retain_ex_forward.5} parent=15 // pred_region
        %p217 = scmp.lt.s32.totalorder %s18, 3
        %s218 = scalar_select %p217, %s18, 3
        %s219 = smul.addr %s218, 4
        %s220 = smul.addr %s219, 8
        %s221 = scalar_lea.vmem %s2, %s220
      $region28: #{retain_ex_forward.5} parent=15 // pred_fallthru
        _
      // Predicated region
      $region29: #{retain_ex_forward.5} parent=15 // pred_check
        %p222 = pneg %p121
      $region30: #{retain_ex_forward.5} parent=15 // pred_check_branch
        %224 = sbr.rel (%p222) target = $region32
      $region31: #{retain_ex_forward.5} parent=15 // pred_region
        %p225 = scmp.lt.s32.totalorder %s18, 3
        %s226 = scalar_select %p225, %s18, 3
        %s227 = smul.addr %s226, 4
        %s228 = scalar_lea.vmem %s3, %s227
      $region32: #{retain_ex_forward.5} parent=15 // pred_fallthru
        _
      // Predicated region
      $region33: #{retain_ex_forward.5} parent=15 // pred_check
        %p229 = pneg %p147
      $region34: #{retain_ex_forward.5} parent=15 // pred_check_branch
        %231 = sbr.rel (%p229) target = $region36
      $region35: #{retain_ex_forward.5} parent=15 // pred_region
        %p232 = scmp.lt.s32.totalorder %s18, 3
        %s233 = scalar_select %p232, %s18, 3
        %s234 = scalar_lea.vmem %s4, %s233
      $region36: #{retain_ex_forward.5} parent=15 // pred_fallthru
        _
    $region16: #{retain_ex_forward.5} parent=5 // pred_fallthru
      _
    %p235 = scmp.le.s32.totalorder 1, %s11
    %p236 = scmp.lt.s32.totalorder %s11, 9
    %p237 = pnand %p235, %p236
    %p238 = pneg %p237
    // Predicated region
    $region37: #{retain_ex_forward.5} parent=5 // pred_check
      _
    $region38: #{retain_ex_forward.5} parent=5 // pred_check_branch
      %240 = sbr.rel (%p237) target = $region40
    $region39: #{retain_ex_forward.5} parent=5 // pred_region
      %s241 = ssub.s32 %s11, 1
      %p242 = scmp.lt.s32.totalorder %s21, 1
      %s243 = scalar_select %p242, %s21, 1
      %s244 = smul.addr %s243, 8
      %s245 = scalar_lea.vmem %s0, %s244
      %p246 = pneg %p49
      %p247 = pneg %p46
      %p248 = scmp.lt.s32.totalorder %s21, 1
      %s249 = scalar_select %p248, %s21, 1
      %s250 = smul.addr %s249, 8
      %s251 = scalar_lea.vmem %s1, %s250
      %p252 = pneg %p75
      %p253 = pneg %p72
      %p254 = scmp.lt.s32.totalorder %s20, 3
      %s255 = scalar_select %p254, %s20, 3
      %s256 = smul.addr %s255, 4
      %s257 = smul.addr %s256, 8
      %s258 = scalar_lea.vmem %s2, %s257
      %p259 = pneg %p101
      %p260 = pneg %p98
      %p261 = scmp.lt.s32.totalorder %s20, 3
      %s262 = scalar_select %p261, %s20, 3
      %s263 = smul.addr %s262, 4
      %s264 = scalar_lea.vmem %s3, %s263
      %p265 = pneg %p127
      %p266 = pneg %p124
      %p267 = scmp.lt.s32.totalorder %s20, 3
      %s268 = scalar_select %p267, %s20, 3
      %s269 = scalar_lea.vmem %s4, %s268
      %p270 = pneg %p153
      %p271 = pneg %p150
      %p272 = pneg %p181
      %p273 = pneg %p178
      %p274 = scmp.lt.s32.totalorder %s20, 3
      %s275 = scalar_select %p274, %s20, 3
      %p276 = scmp.lt.s32.totalorder %s21, 1
      %s277 = scalar_select %p276, %s21, 1
      %s278 = smul.addr %s275, 2
      %s279 = sadd.s32 %s277, %s278
      %s280 = smul.addr %s279, 8
      %s281 = scalar_lea.vmem %s5, %s280
      %p282 = scmp.lt.s32.totalorder %s21, 1
      %s283 = scalar_select %p282, %s21, 1
      %s284 = smul.addr %s283, 8
      %s285 = scalar_lea.vmem %s0, %s284
      %p286 = scmp.lt.s32.totalorder %s21, 1
      %s287 = scalar_select %p286, %s21, 1
      %s288 = smul.addr %s287, 8
      %s289 = scalar_lea.vmem %s1, %s288
      %p290 = scmp.lt.s32.totalorder %s20, 3
      %s291 = scalar_select %p290, %s20, 3
      %s292 = smul.addr %s291, 4
      %s293 = smul.addr %s292, 8
      %s294 = scalar_lea.vmem %s2, %s293
      %p295 = scmp.lt.s32.totalorder %s20, 3
      %s296 = scalar_select %p295, %s20, 3
      %s297 = smul.addr %s296, 4
      %s298 = scalar_lea.vmem %s3, %s297
      %p299 = scmp.lt.s32.totalorder %s20, 3
      %s300 = scalar_select %p299, %s20, 3
      %s301 = scalar_lea.vmem %s4, %s300
      %p302 = scmp.lt.s32.totalorder %s20, 3
      %s303 = scalar_select %p302, %s20, 3
      %p304 = scmp.lt.s32.totalorder %s21, 1
      %s305 = scalar_select %p304, %s21, 1
      %s306 = smul.addr %s303, 2
      %s307 = sadd.s32 %s305, %s306
      %s308 = smul.addr %s307, 8
      %s309 = scalar_lea.vmem %s5, %s308
      %v310 = vld [vmem:[%s285] sm:$0xff]
      %v311 = vld [vmem:[%s294] sm:$0xff]
      %v312 = vld [vmem:[%s294 + $0x8] sm:$0xff]
      %v313 = vld [vmem:[%s294 + $0x10] sm:$0xff]
      %v314 = vld [vmem:[%s294 + $0x18] sm:$0xff]
      %v315 = vld [vmem:[%s289] sm:$0xff]
      %v316 = vld [vmem:[%s298] sm:$0x7]
      %vm317 = vcmask 23552
      %v319 = vsel %vm317, %v315, 0
      %vm321 = vcmask 1042432
      %v323 = vsel %vm321, %v316, 0
      %325 = vmatprep.subr.mxu0 0.0
      %326 = vmatpush1.msra.mxu0 0.0
      %327 = vmatprep.subr.mxu0 0.0
      %328 = vmatpush1.msra.mxu0 0.0
      %329 = vmatprep.subr.mxu0 0.0
      %330 = vmatpush1.msra.mxu0 0.0
      %331 = vmatprep.subr.mxu0 0.0
      %332 = vmatpush1.msra.mxu0 0.0
      %333 = vmatprep.subr.mxu0 0.0
      %334 = vmatpush1.msra.mxu0 0.0
      %335 = vmatprep.subr.mxu0 0.0
      %336 = vmatpush1.msra.mxu0 0.0
      %337 = vmatprep.subr.mxu0 0.0
      %338 = vmatpush1.msra.mxu0 0.0
      %339 = vmatprep.subr.mxu0 0.0
      %340 = vmatpush1.msra.mxu0 0.0
      %341 = vmatprep.subr.mxu0 0.0
      %342 = vmatpush1.msra.mxu0 0.0
      %343 = vmatprep.subr.mxu0 0.0
      %344 = vmatpush1.msra.mxu0 0.0
      %345 = vmatprep.subr.mxu0 0.0
      %346 = vmatpush1.msra.mxu0 0.0
      %347 = vmatprep.subr.mxu0 0.0
      %348 = vmatpush1.msra.mxu0 0.0
      %349 = vmatprep.subr.mxu0 0.0
      %350 = vmatpush1.msra.mxu0 0.0
      %351 = vmatprep.subr.mxu0 0.0
      %352 = vmatpush1.msra.mxu0 0.0
      %353 = vmatprep.subr.mxu0 0.0
      %354 = vmatpush1.msra.mxu0 0.0
      %355 = vmatprep.subr.mxu0 0.0
      %356 = vmatpush1.msra.mxu0 %v323
      %357 = vmatprep.subr.mxu0 0.0
      %358 = vmatpush2.msra.mxu0 0.0
      %359 = vmatprep.subr.mxu0 0.0
      %360 = vmatpush2.msra.mxu0 0.0
      %361 = vmatprep.subr.mxu0 0.0
      %362 = vmatpush2.msra.mxu0 0.0
      %363 = vmatprep.subr.mxu0 0.0
      %364 = vmatpush2.msra.mxu0 0.0
      %365 = vmatprep.subr.mxu0 0.0
      %366 = vmatpush2.msra.mxu0 0.0
      %367 = vmatprep.subr.mxu0 0.0
      %368 = vmatpush2.msra.mxu0 0.0
      %369 = vmatprep.subr.mxu0 0.0
      %370 = vmatpush2.msra.mxu0 0.0
      %371 = vmatprep.subr.mxu0 0.0
      %372 = vmatpush2.msra.mxu0 0.0
      %373 = vmatprep.subr.mxu0 0.0
      %374 = vmatpush2.msra.mxu0 0.0
      %375 = vmatprep.subr.mxu0 0.0
      %376 = vmatpush2.msra.mxu0 0.0
      %377 = vmatprep.subr.mxu0 0.0
      %378 = vmatpush2.msra.mxu0 0.0
      %379 = vmatprep.subr.mxu0 0.0
      %380 = vmatpush2.msra.mxu0 0.0
      %381 = vmatprep.subr.mxu0 0.0
      %382 = vmatpush2.msra.mxu0 0.0
      %383 = vmatprep.subr.mxu0 0.0
      %384 = vmatpush2.msra.mxu0 0.0
      %385 = vmatprep.subr.mxu0 0.0
      %386 = vmatpush2.msra.mxu0 0.0
      %387 = vmatprep.subr.mxu0 0.0
      %388 = vmatpush2.msra.mxu0 0.0
      %389 = vmatprep.mubr.f32.mxu0 0.0
      %390 = vmatmul.mubr.f32.gmra.mxu0 %v319
      %v391 = vpop.f32.mrf.mxu0
      %v392 = vadd.f32 0.0, %v391
      %v393 = vpop.f32.mrf.mxu0
      %394 = vdwg.mxu0
      %vm395 = vcmask 261120
      %v397 = vsel %vm395, %v310, 0
      %399 = vmatprep.subr.mxu0 0.0
      %400 = vmatpush1.msra.mxu0 0.0
      %401 = vmatprep.subr.mxu0 0.0
      %402 = vmatpush1.msra.mxu0 0.0
      %403 = vmatprep.subr.mxu0 0.0
      %404 = vmatpush1.msra.mxu0 0.0
      %405 = vmatprep.subr.mxu0 0.0
      %406 = vmatpush1.msra.mxu0 0.0
      %407 = vmatprep.subr.mxu0 0.0
      %408 = vmatpush1.msra.mxu0 0.0
      %409 = vmatprep.subr.mxu0 0.0
      %410 = vmatpush1.msra.mxu0 0.0
      %411 = vmatprep.subr.mxu0 0.0
      %412 = vmatpush1.msra.mxu0 0.0
      %413 = vmatprep.subr.mxu0 0.0
      %414 = vmatpush1.msra.mxu0 0.0
      %415 = vmatprep.subr.mxu0 0.0
      %416 = vmatpush1.msra.mxu0 0.0
      %417 = vmatprep.subr.mxu0 0.0
      %418 = vmatpush1.msra.mxu0 0.0
      %419 = vmatprep.subr.mxu0 0.0
      %420 = vmatpush1.msra.mxu0 0.0
      %421 = vmatprep.subr.mxu0 0.0
      %422 = vmatpush1.msra.mxu0 0.0
      %423 = vmatprep.subr.mxu0 0.0
      %424 = vmatpush1.msra.mxu0 %v314
      %425 = vmatprep.subr.mxu0 0.0
      %426 = vmatpush1.msra.mxu0 %v313
      %427 = vmatprep.subr.mxu0 0.0
      %428 = vmatpush1.msra.mxu0 %v312
      %429 = vmatprep.subr.mxu0 0.0
      %430 = vmatpush1.msra.mxu0 %v311
      %431 = vmatprep.subr.mxu0 0.0
      %432 = vmatpush2.msra.mxu0 0.0
      %433 = vmatprep.subr.mxu0 0.0
      %434 = vmatpush2.msra.mxu0 0.0
      %435 = vmatprep.subr.mxu0 0.0
      %436 = vmatpush2.msra.mxu0 0.0
      %437 = vmatprep.subr.mxu0 0.0
      %438 = vmatpush2.msra.mxu0 0.0
      %439 = vmatprep.subr.mxu0 0.0
      %440 = vmatpush2.msra.mxu0 0.0
      %441 = vmatprep.subr.mxu0 0.0
      %442 = vmatpush2.msra.mxu0 0.0
      %443 = vmatprep.subr.mxu0 0.0
      %444 = vmatpush2.msra.mxu0 0.0
      %445 = vmatprep.subr.mxu0 0.0
      %446 = vmatpush2.msra.mxu0 0.0
      %447 = vmatprep.subr.mxu0 0.0
      %448 = vmatpush2.msra.mxu0 0.0
      %449 = vmatprep.subr.mxu0 0.0
      %450 = vmatpush2.msra.mxu0 0.0
      %451 = vmatprep.subr.mxu0 0.0
      %452 = vmatpush2.msra.mxu0 0.0
      %453 = vmatprep.subr.mxu0 0.0
      %454 = vmatpush2.msra.mxu0 0.0
      %455 = vmatprep.subr.mxu0 0.0
      %456 = vmatpush2.msra.mxu0 0.0
      %457 = vmatprep.subr.mxu0 0.0
      %458 = vmatpush2.msra.mxu0 0.0
      %459 = vmatprep.subr.mxu0 0.0
      %460 = vmatpush2.msra.mxu0 0.0
      %461 = vmatprep.subr.mxu0 0.0
      %462 = vmatpush2.msra.mxu0 0.0
      %463 = vmatprep.mubr.f32.mxu0 0.0
      %464 = vmatmul.mubr.f32.gmra.mxu0 %v397
      %v465 = vpop.f32.mrf.mxu0
      %v466 = vadd.f32 %v392, %v465
      %v467 = vpop.f32.mrf.mxu0
      %468 = vdwg.mxu0
      %v469 = vld [vmem:[%s301] sm:$0x1]
      %v471 = vlaneseq
      %v472 = vshrl.u32 %v471, 7
      %v473 = vsub.s32 0, %v472
      %v474 = vrot.slane %v469, %v473
      %v476 = vadd.f32 %v466, %v474
      %477 = vst [vmem:[%s309] sm:$0xff] %v476
      %p478 = scmp.lt.s32.totalorder %s20, 3
      %s479 = scalar_select %p478, %s20, 3
      %p480 = scmp.lt.s32.totalorder %s21, 1
      %s481 = scalar_select %p480, %s21, 1
      %s482 = smul.addr %s479, 2
      %s483 = sadd.s32 %s481, %s482
      %s484 = smul.addr %s483, 8
      %s485 = scalar_lea.vmem %s5, %s484
      // Predicated region
      $region41: #{retain_ex_forward.5} parent=39 // pred_check
        %p486 = pneg %p178
      $region42: #{retain_ex_forward.5} parent=39 // pred_check_branch
        %488 = sbr.rel (%p486) target = $region44
      $region43: #{retain_ex_forward.5} parent=39 // pred_region
        _
      $region44: #{retain_ex_forward.5} parent=39 // pred_fallthru
        _
    $region40: #{retain_ex_forward.5} parent=5 // pred_fallthru
      _
    %p489 = scmp.le.s32.totalorder 2, %s11
    // Predicated region
    $region45: #{retain_ex_forward.5} parent=5 // pred_check
      %p490 = pneg %p489
    $region46: #{retain_ex_forward.5} parent=5 // pred_check_branch
      %492 = sbr.rel (%p490) target = $region48
    $region47: #{retain_ex_forward.5} parent=5 // pred_region
      %s493 = ssub.s32 %s11, 2
      // Predicated region
      $region49: #{retain_ex_forward.5} parent=47 // pred_check
        %p494 = pneg %p184
      $region50: #{retain_ex_forward.5} parent=47 // pred_check_branch
        %496 = sbr.rel (%p494) target = $region52
      $region51: #{retain_ex_forward.5} parent=47 // pred_region
        %p497 = scmp.lt.s32.totalorder %s22, 3
        %s498 = scalar_select %p497, %s22, 3
        %p499 = scmp.lt.s32.totalorder %s23, 1
        %s500 = scalar_select %p499, %s23, 1
        %s501 = smul.addr %s498, 2
        %s502 = sadd.s32 %s500, %s501
        %s503 = smul.addr %s502, 8
        %s504 = scalar_lea.vmem %s5, %s503
      $region52: #{retain_ex_forward.5} parent=47 // pred_fallthru
        _
    $region48: #{retain_ex_forward.5} parent=5 // pred_fallthru
      _
  $region6: #{retain_ex_forward.5} parent=0 // loop_footer
    %s15 = sadd.s32 1, %s11
  $region7: #{retain_ex_forward.5} parent=0 // loop_footer_branch
    %10 = sbr.rel target = $region3
  $region8: #{retain_ex_forward.5} parent=0 // loop_exit
    _

// kernel: retain_ex_forward.6
$region0: #{retain_ex_forward.6}
  #allocation0 [shape = 'u32[]', space=smem, size = 0x4, offset = 0x4, fixed_abs, tag = 'smem constant byte address 0x4 - core index']
  #allocation1 [shape = 'u32[144,128]{1,0:T(1,128)}', space=vmem, size = 0x12000, scoped, tag = 'internal scratch']
  #allocation2 [shape = 'f32[2,32]{1,0:T(2,128)}', space=vmem, size = 0x400, scoped, tag = 'scratch operand']
  #allocation3 [shape = 'f32[2,32]{1,0:T(2,128)}', space=vmem, size = 0x400, scoped, tag = 'scratch operand']
  %s0 = inlined_call_operand.vmem [shape: f32[4,8,2,128], index: 0, kind: input, shape index: {}]
  %s1 = inlined_call_operand.vmem [shape: f32[4,32,128], index: 1, kind: input, shape index: {}]
  %s2 = inlined_call_operand.vmem [shape: f32[4,8,2,32], index: 2, kind: output, shape index: {}]
  %s3 = sld [smem:[#allocation0]]
  $region48: #{retain_ex_forward.6} parent=0
    _
  %s5 = ssub.s32 1, %s3
  %s6 = scalar_select 0, %s5, %s3
  loop: start=0, step=1, limit=6
  $region2: #{retain_ex_forward.6} parent=0 // loop_pre_header
    _
  $region3: #{retain_ex_forward.6} parent=0 // loop_header
    %s8 = sphi 0, %s12
    %p9 = scmp.ge.s32.totalorder %s8, 6
    %s18 = sphi 0, %s20
    %s21 = sphi 0, %s18
    %s22 = sphi 0, %s21
    %s38 = sphi 0, %s22
    %s44 = sphi 0, %s46
    %s47 = sphi 0, %s44
    %s48 = sphi 0, %s47
    %s64 = sphi 0, %s48
    %s70 = sphi 0, %s72
    %s73 = sphi 0, %s70
    %s74 = sphi 0, %s73
    %s90 = sphi 0, %s74
  $region4: #{retain_ex_forward.6} parent=0 // loop_header_branch
    %11 = sbr.rel (%p9) target = $region8
  $region5: #{retain_ex_forward.6} parent=0 // loop_body
    %s13 = ssub.s32 %s8, 1
    %s14 = ssub.s32 %s8, 2
    %s15 = sadd.s32 %s8, 1
    %s16 = ssub.s32 %s8, %s15
    %p17 = scmp.eq.s32.totalorder %s16, 0
    %s19 = sadd.s32 %s18, 1
    %s20 = scalar_select %p17, %s18, %s19
    %p23 = pneg %p17
    %p24 = scmp.eq.s32.totalorder %s8, 3
    %p25 = por %p23, %p24
    %p26 = scmp.ne.s32.totalorder %s18, %s21
    %p27 = scmp.eq.s32.totalorder %s8, 0
    %p28 = por %p26, %p27
    %p29 = scmp.ne.s32.totalorder %s18, %s21
    %p30 = scmp.eq.s32.totalorder %s13, 3
    %p31 = por %p29, %p30
    %p32 = scmp.ne.s32.totalorder %s21, %s22
    %p33 = scmp.eq.s32.totalorder %s13, 0
    %p34 = por %p32, %p33
    %p35 = scmp.ne.s32.totalorder %s21, %s22
    %p36 = scmp.eq.s32.totalorder %s14, 3
    %p37 = por %p35, %p36
    %p39 = scmp.ne.s32.totalorder %s22, %s38
    %p40 = scmp.eq.s32.totalorder %s14, 0
    %p41 = por %p39, %p40
    %s42 = ssub.s32 %s8, %s15
    %p43 = scmp.eq.s32.totalorder %s42, 0
    %s45 = sadd.s32 %s44, 1
    %s46 = scalar_select %p43, %s44, %s45
    %p49 = pneg %p43
    %p50 = scmp.eq.s32.totalorder %s8, 3
    %p51 = por %p49, %p50
    %p52 = scmp.ne.s32.totalorder %s44, %s47
    %p53 = scmp.eq.s32.totalorder %s8, 0
    %p54 = por %p52, %p53
    %p55 = scmp.ne.s32.totalorder %s44, %s47
    %p56 = scmp.eq.s32.totalorder %s13, 3
    %p57 = por %p55, %p56
    %p58 = scmp.ne.s32.totalorder %s47, %s48
    %p59 = scmp.eq.s32.totalorder %s13, 0
    %p60 = por %p58, %p59
    %p61 = scmp.ne.s32.totalorder %s47, %s48
    %p62 = scmp.eq.s32.totalorder %s14, 3
    %p63 = por %p61, %p62
    %p65 = scmp.ne.s32.totalorder %s48, %s64
    %p66 = scmp.eq.s32.totalorder %s14, 0
    %p67 = por %p65, %p66
    %s68 = ssub.s32 %s8, %s15
    %p69 = scmp.eq.s32.totalorder %s68, 0
    %s71 = sadd.s32 %s70, 1
    %s72 = scalar_select %p69, %s70, %s71
    %p75 = pneg %p69
    %p76 = scmp.eq.s32.totalorder %s8, 3
    %p77 = por %p75, %p76
    %p78 = scmp.ne.s32.totalorder %s70, %s73
    %p79 = scmp.eq.s32.totalorder %s8, 0
    %p80 = por %p78, %p79
    %p81 = scmp.ne.s32.totalorder %s70, %s73
    %p82 = scmp.eq.s32.totalorder %s13, 3
    %p83 = por %p81, %p82
    %p84 = scmp.ne.s32.totalorder %s73, %s74
    %p85 = scmp.eq.s32.totalorder %s13, 0
    %p86 = por %p84, %p85
    %p87 = scmp.ne.s32.totalorder %s73, %s74
    %p88 = scmp.eq.s32.totalorder %s14, 3
    %p89 = por %p87, %p88
    %p91 = scmp.ne.s32.totalorder %s74, %s90
    %p92 = scmp.eq.s32.totalorder %s14, 0
    %p93 = por %p91, %p92
    %p94 = scmp.le.s32.totalorder 1, %s8
    %p95 = scmp.lt.s32.totalorder %s8, 5
    %p96 = pnand %p94, %p95
    %p97 = pneg %p96
    // Predicated region
    $region9: #{retain_ex_forward.6} parent=5 // pred_check
      _
    $region10: #{retain_ex_forward.6} parent=5 // pred_check_branch
      %99 = sbr.rel (%p96) target = $region12
    $region11: #{retain_ex_forward.6} parent=5 // pred_region
      %s100 = ssub.s32 %s8, 1
    $region12: #{retain_ex_forward.6} parent=5 // pred_fallthru
      _
    %p101 = scmp.lt.s32.totalorder %s8, 4
    // Predicated region
    $region13: #{retain_ex_forward.6} parent=5 // pred_check
      %p102 = pneg %p101
    $region14: #{retain_ex_forward.6} parent=5 // pred_check_branch
      %104 = sbr.rel (%p102) target = $region16
    $region15: #{retain_ex_forward.6} parent=5 // pred_region
      // Predicated region
      $region17: #{retain_ex_forward.6} parent=15 // pred_check
        %p105 = pneg %p28
      $region18: #{retain_ex_forward.6} parent=15 // pred_check_branch
        %107 = sbr.rel (%p105) target = $region20
      $region19: #{retain_ex_forward.6} parent=15 // pred_region
        %p108 = scmp.lt.s32.totalorder %s8, 3
        %s109 = scalar_select %p108, %s8, 3
        %s110 = smul.addr %s109, 8
        %s111 = smul.addr %s110, 2
        %s112 = scalar_lea.vmem %s0, %s111
      $region20: #{retain_ex_forward.6} parent=15 // pred_fallthru
        _
      // Predicated region
      $region21: #{retain_ex_forward.6} parent=15 // pred_check
        %p113 = pneg %p54
      $region22: #{retain_ex_forward.6} parent=15 // pred_check_branch
        %115 = sbr.rel (%p113) target = $region24
      $region23: #{retain_ex_forward.6} parent=15 // pred_region
        %p116 = scmp.lt.s32.totalorder %s8, 3
        %s117 = scalar_select %p116, %s8, 3
        %s118 = smul.addr %s117, 4
        %s119 = smul.addr %s118, 8
        %s120 = scalar_lea.vmem %s1, %s119
      $region24: #{retain_ex_forward.6} parent=15 // pred_fallthru
        _
    $region16: #{retain_ex_forward.6} parent=5 // pred_fallthru
      _
    %p121 = scmp.le.s32.totalorder 1, %s8
    %p122 = scmp.lt.s32.totalorder %s8, 5
    %p123 = pnand %p121, %p122
    %p124 = pneg %p123
    // Predicated region
    $region25: #{retain_ex_forward.6} parent=5 // pred_check
      _
    $region26: #{retain_ex_forward.6} parent=5 // pred_check_branch
      %126 = sbr.rel (%p123) target = $region28
    $region27: #{retain_ex_forward.6} parent=5 // pred_region
      %s127 = ssub.s32 %s8, 1
      %p128 = scmp.lt.s32.totalorder %s13, 3
      %s129 = scalar_select %p128, %s13, 3
      %s130 = smul.addr %s129, 8
      %s131 = smul.addr %s130, 2
      %s132 = scalar_lea.vmem %s0, %s131
      %p133 = pneg %p34
      %p134 = pneg %p31
      %p135 = scmp.lt.s32.totalorder %s13, 3
      %s136 = scalar_select %p135, %s13, 3
      %s137 = smul.addr %s136, 4
      %s138 = smul.addr %s137, 8
      %s139 = scalar_lea.vmem %s1, %s138
      %p140 = pneg %p60
      %p141 = pneg %p57
      %p142 = pneg %p86
      %p143 = pneg %p83
      %p144 = scmp.lt.s32.totalorder %s13, 3
      %s145 = scalar_select %p144, %s13, 3
      %s146 = smul.addr %s145, 8
      %s147 = smul.addr %s146, 2
      %s148 = scalar_lea.vmem %s2, %s147
      %p149 = scmp.lt.s32.totalorder %s13, 3
      %s150 = scalar_select %p149, %s13, 3
      %s151 = smul.addr %s150, 8
      %s152 = smul.addr %s151, 2
      %s153 = scalar_lea.vmem %s0, %s152
      %p154 = scmp.lt.s32.totalorder %s13, 3
      %s155 = scalar_select %p154, %s13, 3
      %s156 = smul.addr %s155, 4
      %s157 = smul.addr %s156, 8
      %s158 = scalar_lea.vmem %s1, %s157
      %p159 = scmp.lt.s32.totalorder %s13, 3
      %s160 = scalar_select %p159, %s13, 3
      %s161 = smul.addr %s160, 8
      %s162 = smul.addr %s161, 2
      %s163 = scalar_lea.vmem %s2, %s162
      %p164 = scmp.lt.s32.totalorder %s13, 0
      %s165 = ssub.s32 0, %s13
      %s166 = scalar_select %p164, %s165, %s13
      %s167 = sand.u32 %s166, 1
      %s168 = ssub.s32 0, %s167
      %s169 = scalar_select %p164, %s168, %s167
      %p170 = scmp.ne.s32.totalorder %s169, 0
      %p171 = scmp.lt.s32.totalorder %s169, 0
      %p172 = pnand %p171, %p170
      %p173 = pneg %p172
      %s174 = sadd.s32 %s169, 2
      %s175 = scalar_select %p173, %s174, %s169
      %vm176 = vcmask 254976
      %177 = vst.msk [vmem:[#allocation2] sm:$0x3] %vm176, 0.0
      %178 = vst.msk [vmem:[#allocation3] sm:$0x3] %vm176, 0.0
      %v179 = vld [vmem:[%s158] sm:$0xff]
      %v180 = vld [vmem:[%s158 + $0x8] sm:$0xff]
      %v181 = vld [vmem:[%s158 + $0x10] sm:$0xff]
      %v182 = vld [vmem:[%s158 + $0x18] sm:$0xff]
      loop: start=0, step=1, limit=8
      $region29: #{retain_ex_forward.6} parent=27 // loop_pre_header
        _
      $region30: #{retain_ex_forward.6} parent=27 // loop_header
        %s184 = sphi 0, %s188
        %p185 = scmp.ge.s32.totalorder %s184, 8
      $region31: #{retain_ex_forward.6} parent=27 // loop_header_branch
        %187 = sbr.rel (%p185) target = $region35
      $region32: #{retain_ex_forward.6} parent=27 // loop_body
        %p189 = scmp.eq.s32.totalorder %s175, 1
        %s190 = ssub.s32 7, %s184
        %s191 = scalar_select %p189, %s190, %s184
        %s192 = smul.u32 %s191, 2
        %s193 = scalar_lea.vmem %s153, %s192
        %v194 = vld [vmem:[%s193] sm:$0x3]
        %v195 = vld [vmem:[#allocation2] sm:$0x3]
        %vm196 = vcmask 261120
        %v198 = vsel %vm196, %v195, 0
        %200 = vmatprep.subr.mxu0 0.0
        %201 = vmatpush1.msra.mxu0 0.0
        %202 = vmatprep.subr.mxu0 0.0
        %203 = vmatpush1.msra.mxu0 0.0
        %204 = vmatprep.subr.mxu0 0.0
        %205 = vmatpush1.msra.mxu0 0.0
        %206 = vmatprep.subr.mxu0 0.0
        %207 = vmatpush1.msra.mxu0 0.0
        %208 = vmatprep.subr.mxu0 0.0
        %209 = vmatpush1.msra.mxu0 0.0
        %210 = vmatprep.subr.mxu0 0.0
        %211 = vmatpush1.msra.mxu0 0.0
        %212 = vmatprep.subr.mxu0 0.0
        %213 = vmatpush1.msra.mxu0 0.0
        %214 = vmatprep.subr.mxu0 0.0
        %215 = vmatpush1.msra.mxu0 0.0
        %216 = vmatprep.subr.mxu0 0.0
        %217 = vmatpush1.msra.mxu0 0.0
        %218 = vmatprep.subr.mxu0 0.0
        %219 = vmatpush1.msra.mxu0 0.0
        %220 = vmatprep.subr.mxu0 0.0
        %221 = vmatpush1.msra.mxu0 0.0
        %222 = vmatprep.subr.mxu0 0.0
        %223 = vmatpush1.msra.mxu0 0.0
        %224 = vmatprep.subr.mxu0 0.0
        %225 = vmatpush1.msra.mxu0 %v182
        %226 = vmatprep.subr.mxu0 0.0
        %227 = vmatpush1.msra.mxu0 %v181
        %228 = vmatprep.subr.mxu0 0.0
        %229 = vmatpush1.msra.mxu0 %v180
        %230 = vmatprep.subr.mxu0 0.0
        %231 = vmatpush1.msra.mxu0 %v179
        %232 = vmatprep.subr.mxu0 0.0
        %233 = vmatpush2.msra.mxu0 0.0
        %234 = vmatprep.subr.mxu0 0.0
        %235 = vmatpush2.msra.mxu0 0.0
        %236 = vmatprep.subr.mxu0 0.0
        %237 = vmatpush2.msra.mxu0 0.0
        %238 = vmatprep.subr.mxu0 0.0
        %239 = vmatpush2.msra.mxu0 0.0
        %240 = vmatprep.subr.mxu0 0.0
        %241 = vmatpush2.msra.mxu0 0.0
        %242 = vmatprep.subr.mxu0 0.0
        %243 = vmatpush2.msra.mxu0 0.0
        %244 = vmatprep.subr.mxu0 0.0
        %245 = vmatpush2.msra.mxu0 0.0
        %246 = vmatprep.subr.mxu0 0.0
        %247 = vmatpush2.msra.mxu0 0.0
        %248 = vmatprep.subr.mxu0 0.0
        %249 = vmatpush2.msra.mxu0 0.0
        %250 = vmatprep.subr.mxu0 0.0
        %251 = vmatpush2.msra.mxu0 0.0
        %252 = vmatprep.subr.mxu0 0.0
        %253 = vmatpush2.msra.mxu0 0.0
        %254 = vmatprep.subr.mxu0 0.0
        %255 = vmatpush2.msra.mxu0 0.0
        %256 = vmatprep.subr.mxu0 0.0
        %257 = vmatpush2.msra.mxu0 0.0
        %258 = vmatprep.subr.mxu0 0.0
        %259 = vmatpush2.msra.mxu0 0.0
        %260 = vmatprep.subr.mxu0 0.0
        %261 = vmatpush2.msra.mxu0 0.0
        %262 = vmatprep.subr.mxu0 0.0
        %263 = vmatpush2.msra.mxu0 0.0
        %264 = vmatprep.mubr.f32.mxu0 0.0
        %265 = vmatmul.mubr.f32.gmra.mxu0 %v198
        %v266 = vpop.f32.mrf.mxu0
        %v267 = vadd.f32 0.0, %v266
        %v268 = vpop.f32.mrf.mxu0
        %269 = vdwg.mxu0
        %v270 = vadd.f32 %v194, %v267
        %v271 = vxor.u32 %v270, 2147483648
        %v272 = vmul.f32 %v271, 1.442695
        %v273 = vpow.pop %v272
        %v274 = vadd.f32 %v273, 1.0
        %v275 = vrcp.pop %v274
        %v276 = vmul.f32 1.0, %v275
        %v277 = vtanh.pop %v270
        %v278 = vld [vmem:[#allocation3] sm:$0x3]
        %280 = vrot.lane.b32.xlu0 %v278, 32
        %v281 = vpop.permute.xlu0 %280
        %v283 = vmul.f32 %v276, %v281
        %285 = vrot.lane.b32.xlu0 %v277, 64
        %v286 = vpop.permute.xlu0 %285
        %v288 = vmul.f32 %v276, %v286
        %290 = vrot.lane.b32.xlu0 %v288, 32
        %v291 = vpop.permute.xlu0 %290
        %v293 = vadd.f32 %v283, %v291
        %v294 = vtanh.pop %v293
        %296 = vrot.lane.b32.xlu0 %v294, 64
        %v297 = vpop.permute.xlu0 %296
        %v299 = vmul.f32 %v276, %v297
        %301 = vrot.lane.b32.xlu0 %v293, 96
        %v302 = vpop.permute.xlu0 %301
        %304 = vst.msk [vmem:[#allocation3] sm:$0x3] %vm176, %v302
        %306 = vrot.lane.b32.xlu0 %v299, 32
        %v307 = vpop.permute.xlu0 %306
        %309 = vst.msk [vmem:[#allocation2] sm:$0x3] %vm176, %v307
        %s310 = scalar_lea.vmem %s163, %s192
        %311 = vst.msk [vmem:[%s310] sm:$0x3] %vm176, %v307
      $region33: #{retain_ex_forward.6} parent=27 // loop_footer
        %s188 = sadd.s32 1, %s184
      $region34: #{retain_ex_forward.6} parent=27 // loop_footer_branch
        %183 = sbr.rel target = $region30
      $region35: #{retain_ex_forward.6} parent=27 // loop_exit
        _
      %p312 = scmp.lt.s32.totalorder %s13, 3
      %s313 = scalar_select %p312, %s13, 3
      %s314 = smul.addr %s313, 8
      %s315 = smul.addr %s314, 2
      %s316 = scalar_lea.vmem %s2, %s315
      // Predicated region
      $region36: #{retain_ex_forward.6} parent=27 // pred_check
        %p317 = pneg %p83
      $region37: #{retain_ex_forward.6} parent=27 // pred_check_branch
        %319 = sbr.rel (%p317) target = $region39
      $region38: #{retain_ex_forward.6} parent=27 // pred_region
        _
      $region39: #{retain_ex_forward.6} parent=27 // pred_fallthru
        _
    $region28: #{retain_ex_forward.6} parent=5 // pred_fallthru
      _
    %p320 = scmp.le.s32.totalorder 2, %s8
    // Predicated region
    $region40: #{retain_ex_forward.6} parent=5 // pred_check
      %p321 = pneg %p320
    $region41: #{retain_ex_forward.6} parent=5 // pred_check_branch
      %323 = sbr.rel (%p321) target = $region43
    $region42: #{retain_ex_forward.6} parent=5 // pred_region
      %s324 = ssub.s32 %s8, 2
      // Predicated region
      $region44: #{retain_ex_forward.6} parent=42 // pred_check
        %p325 = pneg %p89
      $region45: #{retain_ex_forward.6} parent=42 // pred_check_branch
        %327 = sbr.rel (%p325) target = $region47
      $region46: #{retain_ex_forward.6} parent=42 // pred_region
        %p328 = scmp.lt.s32.totalorder %s14, 3
        %s329 = scalar_select %p328, %s14, 3
        %s330 = smul.addr %s329, 8
        %s331 = smul.addr %s330, 2
        %s332 = scalar_lea.vmem %s2, %s331
      $region47: #{retain_ex_forward.6} parent=42 // pred_fallthru
        _
    $region43: #{retain_ex_forward.6} parent=5 // pred_fallthru
      _
  $region6: #{retain_ex_forward.6} parent=0 // loop_footer
    %s12 = sadd.s32 1, %s8
  $region7: #{retain_ex_forward.6} parent=0 // loop_footer_branch
    %7 = sbr.rel target = $region3
  $region8: #{retain_ex_forward.6} parent=0 // loop_exit
    _

// kernel: retain_ex_forward.7
$region0: #{retain_ex_forward.7}
  #allocation0 [shape = 'u32[]', space=smem, size = 0x4, offset = 0x4, fixed_abs, tag = 'smem constant byte address 0x4 - core index']
  #allocation1 [shape = 'u32[144,128]{1,0:T(1,128)}', space=vmem, size = 0x12000, scoped, tag = 'internal scratch']
  %s0 = inlined_call_operand.vmem [shape: f32[4,16,32], index: 0, kind: input, shape index: {}]
  %s1 = inlined_call_operand.vmem [shape: f32[16,32], index: 1, kind: input, shape index: {}]
  %s2 = inlined_call_operand.vmem [shape: f32[2,32,1], index: 2, kind: input, shape index: {}]
  %s3 = inlined_call_operand.vmem [shape: f32[2,32,32], index: 3, kind: input, shape index: {}]
  %s4 = inlined_call_operand.vmem [shape: f32[32,5], index: 4, kind: input, shape index: {}]
  %s5 = inlined_call_operand.hbm [shape: f32[2,5], index: 5, kind: output, shape index: {}]
  %s6 = sld [smem:[#allocation0]]
  $region30: #{retain_ex_forward.7} parent=0
    _
  %s8 = ssub.s32 1, %s6
  %s9 = scalar_select 0, %s8, %s6
  $region1: #{retain_ex_forward.7} parent=0
    #allocation2 [shape = 'u8[1024]{0}', space=vmem, size = 0x400, scoped, tag = 'output window, operand 0, single buffered']
    #allocation3 [shape = 's32[1]{0}', space=sflag, size = 0x4, scoped, tag = 'scoped memory for retain_ex_forward.7']
    %10 = vsyncpa [#allocation3], 0
    // Predicated region
    $region2: #{retain_ex_forward.7} parent=1 // pred_check
      _
    $region3: #{retain_ex_forward.7} parent=1 // pred_check_branch
      %12 = sbr.rel (0) target = $region5
    $region4: #{retain_ex_forward.7} parent=1 // pred_region
      _
    $region5: #{retain_ex_forward.7} parent=1 // pred_fallthru
      _
    // Predicated region
    $region6: #{retain_ex_forward.7} parent=1 // pred_check
      _
    $region7: #{retain_ex_forward.7} parent=1 // pred_check_branch
      %14 = sbr.rel (0) target = $region9
    $region8: #{retain_ex_forward.7} parent=1 // pred_region
      _
    $region9: #{retain_ex_forward.7} parent=1 // pred_fallthru
      _
    // Predicated region
    $region10: #{retain_ex_forward.7} parent=1 // pred_check
      _
    $region11: #{retain_ex_forward.7} parent=1 // pred_check_branch
      %16 = sbr.rel (0) target = $region13
    $region12: #{retain_ex_forward.7} parent=1 // pred_region
      _
    $region13: #{retain_ex_forward.7} parent=1 // pred_fallthru
      _
    // Predicated region
    $region14: #{retain_ex_forward.7} parent=1 // pred_check
      _
    $region15: #{retain_ex_forward.7} parent=1 // pred_check_branch
      %18 = sbr.rel (0) target = $region17
    $region16: #{retain_ex_forward.7} parent=1 // pred_region
      _
    $region17: #{retain_ex_forward.7} parent=1 // pred_fallthru
      _
    // Predicated region
    $region18: #{retain_ex_forward.7} parent=1 // pred_check
      _
    $region19: #{retain_ex_forward.7} parent=1 // pred_check_branch
      %20 = sbr.rel (0) target = $region21
    $region20: #{retain_ex_forward.7} parent=1 // pred_region
      _
    $region21: #{retain_ex_forward.7} parent=1 // pred_fallthru
      _
    %v21 = vld [vmem:[%s0] sm:$0xff]
    %v22 = vld [vmem:[%s0 + $0x8] sm:$0xff]
    %s23 = scalar_lea.vmem %s0, 16
    %v24 = vld [vmem:[%s23] sm:$0xff]
    %v25 = vld [vmem:[%s23 + $0x8] sm:$0xff]
    %s26 = scalar_lea.vmem %s0, 32
    %v27 = vld [vmem:[%s26] sm:$0xff]
    %v28 = vld [vmem:[%s26 + $0x8] sm:$0xff]
    %s29 = scalar_lea.vmem %s0, 48
    %v30 = vld [vmem:[%s29] sm:$0xff]
    %v31 = vld [vmem:[%s29 + $0x8] sm:$0xff]
    %v32 = vld [vmem:[%s2] sm:$0xff]
    %v33 = vld [vmem:[%s2 + $0x8] sm:$0xff]
    %v34 = vld [vmem:[%s2 + $0x10] sm:$0xff]
    %v35 = vld [vmem:[%s2 + $0x18] sm:$0xff]
    %s36 = scalar_lea.vmem %s2, 32
    %v37 = vld [vmem:[%s36] sm:$0xff]
    %v38 = vld [vmem:[%s36 + $0x8] sm:$0xff]
    %v39 = vld [vmem:[%s36 + $0x10] sm:$0xff]
    %v40 = vld [vmem:[%s36 + $0x18] sm:$0xff]
    %vm41 = vcmask 261120
    %v43 = vsel %vm41, %v24, 0
    %v46 = vsel %vm41, %v25, 0
    %48 = vmatprep.subr.mxu0 0.0
    %49 = vmatpush1.msra.mxu0 0.0
    %50 = vmatprep.subr.mxu0 0.0
    %51 = vmatpush1.msra.mxu0 0.0
    %52 = vmatprep.subr.mxu0 0.0
    %53 = vmatpush1.msra.mxu0 0.0
    %54 = vmatprep.subr.mxu0 0.0
    %55 = vmatpush1.msra.mxu0 0.0
    %56 = vmatprep.subr.mxu0 0.0
    %57 = vmatpush1.msra.mxu0 0.0
    %58 = vmatprep.subr.mxu0 0.0
    %59 = vmatpush1.msra.mxu0 0.0
    %60 = vmatprep.subr.mxu0 0.0
    %61 = vmatpush1.msra.mxu0 0.0
    %62 = vmatprep.subr.mxu0 0.0
    %63 = vmatpush1.msra.mxu0 0.0
    %64 = vmatprep.subr.mxu0 0.0
    %65 = vmatpush1.msra.mxu0 0.0
    %66 = vmatprep.subr.mxu0 0.0
    %67 = vmatpush1.msra.mxu0 0.0
    %68 = vmatprep.subr.mxu0 0.0
    %69 = vmatpush1.msra.mxu0 0.0
    %70 = vmatprep.subr.mxu0 0.0
    %71 = vmatpush1.msra.mxu0 0.0
    %72 = vmatprep.subr.mxu0 0.0
    %73 = vmatpush1.msra.mxu0 %v40
    %74 = vmatprep.subr.mxu0 0.0
    %75 = vmatpush1.msra.mxu0 %v39
    %76 = vmatprep.subr.mxu0 0.0
    %77 = vmatpush1.msra.mxu0 %v38
    %78 = vmatprep.subr.mxu0 0.0
    %79 = vmatpush1.msra.mxu0 %v37
    %80 = vmatprep.subr.mxu0 0.0
    %81 = vmatpush2.msra.mxu0 0.0
    %82 = vmatprep.subr.mxu0 0.0
    %83 = vmatpush2.msra.mxu0 0.0
    %84 = vmatprep.subr.mxu0 0.0
    %85 = vmatpush2.msra.mxu0 0.0
    %86 = vmatprep.subr.mxu0 0.0
    %87 = vmatpush2.msra.mxu0 0.0
    %88 = vmatprep.subr.mxu0 0.0
    %89 = vmatpush2.msra.mxu0 0.0
    %90 = vmatprep.subr.mxu0 0.0
    %91 = vmatpush2.msra.mxu0 0.0
    %92 = vmatprep.subr.mxu0 0.0
    %93 = vmatpush2.msra.mxu0 0.0
    %94 = vmatprep.subr.mxu0 0.0
    %95 = vmatpush2.msra.mxu0 0.0
    %96 = vmatprep.subr.mxu0 0.0
    %97 = vmatpush2.msra.mxu0 0.0
    %98 = vmatprep.subr.mxu0 0.0
    %99 = vmatpush2.msra.mxu0 0.0
    %100 = vmatprep.subr.mxu0 0.0
    %101 = vmatpush2.msra.mxu0 0.0
    %102 = vmatprep.subr.mxu0 0.0
    %103 = vmatpush2.msra.mxu0 0.0
    %104 = vmatprep.subr.mxu0 0.0
    %105 = vmatpush2.msra.mxu0 0.0
    %106 = vmatprep.subr.mxu0 0.0
    %107 = vmatpush2.msra.mxu0 0.0
    %108 = vmatprep.subr.mxu0 0.0
    %109 = vmatpush2.msra.mxu0 0.0
    %110 = vmatprep.subr.mxu0 0.0
    %111 = vmatpush2.msra.mxu0 0.0
    %112 = vmatprep.mubr.f32.mxu0 0.0
    %113 = vmatmul.mubr.f32.gmra.mxu0 %v43
    %v114 = vpop.f32.mrf.mxu0
    %v115 = vadd.f32 0.0, %v114
    %v116 = vpop.f32.mrf.mxu0
    %117 = vmatprep.mubr.f32.mxu0 0.0
    %118 = vmatmul.mubr.f32.gmra.mxu0 %v46
    %v119 = vpop.f32.mrf.mxu0
    %v120 = vadd.f32 0.0, %v119
    %v121 = vpop.f32.mrf.mxu0
    %122 = vdwg.mxu0
    %v124 = vsel %vm41, %v21, 0
    %v127 = vsel %vm41, %v22, 0
    %129 = vmatprep.subr.mxu0 0.0
    %130 = vmatpush1.msra.mxu0 0.0
    %131 = vmatprep.subr.mxu0 0.0
    %132 = vmatpush1.msra.mxu0 0.0
    %133 = vmatprep.subr.mxu0 0.0
    %134 = vmatpush1.msra.mxu0 0.0
    %135 = vmatprep.subr.mxu0 0.0
    %136 = vmatpush1.msra.mxu0 0.0
    %137 = vmatprep.subr.mxu0 0.0
    %138 = vmatpush1.msra.mxu0 0.0
    %139 = vmatprep.subr.mxu0 0.0
    %140 = vmatpush1.msra.mxu0 0.0
    %141 = vmatprep.subr.mxu0 0.0
    %142 = vmatpush1.msra.mxu0 0.0
    %143 = vmatprep.subr.mxu0 0.0
    %144 = vmatpush1.msra.mxu0 0.0
    %145 = vmatprep.subr.mxu0 0.0
    %146 = vmatpush1.msra.mxu0 0.0
    %147 = vmatprep.subr.mxu0 0.0
    %148 = vmatpush1.msra.mxu0 0.0
    %149 = vmatprep.subr.mxu0 0.0
    %150 = vmatpush1.msra.mxu0 0.0
    %151 = vmatprep.subr.mxu0 0.0
    %152 = vmatpush1.msra.mxu0 0.0
    %153 = vmatprep.subr.mxu0 0.0
    %154 = vmatpush1.msra.mxu0 %v35
    %155 = vmatprep.subr.mxu0 0.0
    %156 = vmatpush1.msra.mxu0 %v34
    %157 = vmatprep.subr.mxu0 0.0
    %158 = vmatpush1.msra.mxu0 %v33
    %159 = vmatprep.subr.mxu0 0.0
    %160 = vmatpush1.msra.mxu0 %v32
    %161 = vmatprep.subr.mxu0 0.0
    %162 = vmatpush2.msra.mxu0 0.0
    %163 = vmatprep.subr.mxu0 0.0
    %164 = vmatpush2.msra.mxu0 0.0
    %165 = vmatprep.subr.mxu0 0.0
    %166 = vmatpush2.msra.mxu0 0.0
    %167 = vmatprep.subr.mxu0 0.0
    %168 = vmatpush2.msra.mxu0 0.0
    %169 = vmatprep.subr.mxu0 0.0
    %170 = vmatpush2.msra.mxu0 0.0
    %171 = vmatprep.subr.mxu0 0.0
    %172 = vmatpush2.msra.mxu0 0.0
    %173 = vmatprep.subr.mxu0 0.0
    %174 = vmatpush2.msra.mxu0 0.0
    %175 = vmatprep.subr.mxu0 0.0
    %176 = vmatpush2.msra.mxu0 0.0
    %177 = vmatprep.subr.mxu0 0.0
    %178 = vmatpush2.msra.mxu0 0.0
    %179 = vmatprep.subr.mxu0 0.0
    %180 = vmatpush2.msra.mxu0 0.0
    %181 = vmatprep.subr.mxu0 0.0
    %182 = vmatpush2.msra.mxu0 0.0
    %183 = vmatprep.subr.mxu0 0.0
    %184 = vmatpush2.msra.mxu0 0.0
    %185 = vmatprep.subr.mxu0 0.0
    %186 = vmatpush2.msra.mxu0 0.0
    %187 = vmatprep.subr.mxu0 0.0
    %188 = vmatpush2.msra.mxu0 0.0
    %189 = vmatprep.subr.mxu0 0.0
    %190 = vmatpush2.msra.mxu0 0.0
    %191 = vmatprep.subr.mxu0 0.0
    %192 = vmatpush2.msra.mxu0 0.0
    %193 = vmatprep.mubr.f32.mxu0 0.0
    %194 = vmatmul.mubr.f32.gmra.mxu0 %v124
    %v195 = vpop.f32.mrf.mxu0
    %v196 = vadd.f32 %v115, %v195
    %v197 = vpop.f32.mrf.mxu0
    %198 = vmatprep.mubr.f32.mxu0 0.0
    %199 = vmatmul.mubr.f32.gmra.mxu0 %v127
    %v200 = vpop.f32.mrf.mxu0
    %v201 = vadd.f32 %v120, %v200
    %v202 = vpop.f32.mrf.mxu0
    %203 = vdwg.mxu0
    %vm204 = vcmask 7168
    %v205 = vsel %vm204, %v196, -inf
    %v206 = vsel %vm204, %v201, -inf
    %v207 = vmax.f32 %v205, %v206
    %v208 = vrot.slane %v207, 4
    %v209 = vmax.f32 %v207, %v208
    %v210 = vrot.slane %v209, 2
    %v211 = vmax.f32 %v209, %v210
    %v212 = vrot.slane %v211, 1
    %v213 = vmax.f32 %v211, %v212
    %v214 = vsub.f32 %v196, %v213
    %v215 = vsub.f32 %v201, %v213
    %v216 = vmul.f32 %v214, 1.442695
    %v217 = vpow.pop %v216
    %v218 = vmul.f32 %v215, 1.442695
    %v219 = vpow.pop %v218
    %v220 = vlaneseq
    %v221 = vand.u32 %v220, 127
    %vm222 = vcmp.lt.s32.totalorder %v221, 0
    %v223 = vsub.s32 0, %v221
    %v224 = vsel %vm222, %v223, %v221
    %v225 = vshrl.u32 %v224, 1
    %v226 = vand.u32 %v224, 1
    %v227 = vsub.s32 0, %v226
    %v228 = vsel %vm222, %v227, %v226
    %vm229 = vcmp.ne.s32.totalorder %v228, 0
    %vm230 = vcmp.lt.s32.totalorder %v228, 0
    %vm231 = vmand %vm230, %vm229
    %v232 = vadd.s32 %v228, 2
    %v233 = vsel %vm231, %v232, %v228
    %v234 = vlaneseq
    %v235 = vshrl.u32 %v234, 7
    %vm236 = vcmp.eq.s32.totalorder %v233, %v235
    %v237 = vsel %vm236, 1, 0
    %v238 = vcvt.s32.f32 %v237
    %v239 = vadd.s32 %v235, 8
    %vm240 = vcmp.lt.s32.totalorder %v235, 0
    %v241 = vsub.s32 0, %v235
    %v242 = vsel %vm240, %v241, %v235
    %v243 = vshrl.u32 %v242, 1
    %v244 = vand.u32 %v242, 1
    %v245 = vsub.s32 0, %v244
    %v246 = vsel %vm240, %v245, %v244
    %vm247 = vcmp.lt.s32.totalorder %v239, 0
    %v248 = vsub.s32 0, %v239
    %v249 = vsel %vm247, %v248, %v239
    %v250 = vshrl.u32 %v249, 1
    %v251 = vand.u32 %v249, 1
    %v252 = vsub.s32 0, %v251
    %v253 = vsel %vm247, %v252, %v251
    %vm254 = vcmp.ne.s32.totalorder %v246, 0
    %vm255 = vcmp.ne.s32.totalorder %v253, 0
    %vm256 = vcmp.lt.s32.totalorder %v246, 0
    %vm257 = vcmp.lt.s32.totalorder %v253, 0
    %vm258 = vmand %vm256, %vm254
    %vm259 = vmand %vm257, %vm255
    %v260 = vadd.s32 %v246, 2
    %v261 = vadd.s32 %v253, 2
    %v262 = vsel %vm258, %v260, %v246
    %v263 = vsel %vm259, %v261, %v253
    %vm264 = vcmp.eq.s32.totalorder %v262, %v221
    %vm265 = vcmp.eq.s32.totalorder %v263, %v221
    %v266 = vsel %vm264, 1, 0
    %v267 = vsel %vm265, 1, 0
    %v268 = vcvt.s32.f32 %v266
    %v269 = vcvt.s32.f32 %v267
    %vm270 = vcmask 130048
    %v272 = vsel %vm270, %v238, 0
    %274 = vmatprep.subr.mxu0 0.0
    %275 = vmatpush1.msra.mxu0 0.0
    %276 = vmatprep.subr.mxu0 0.0
    %277 = vmatpush1.msra.mxu0 0.0
    %278 = vmatprep.subr.mxu0 0.0
    %279 = vmatpush1.msra.mxu0 0.0
    %280 = vmatprep.subr.mxu0 0.0
    %281 = vmatpush1.msra.mxu0 0.0
    %282 = vmatprep.subr.mxu0 0.0
    %283 = vmatpush1.msra.mxu0 0.0
    %284 = vmatprep.subr.mxu0 0.0
    %285 = vmatpush1.msra.mxu0 0.0
    %286 = vmatprep.subr.mxu0 0.0
    %287 = vmatpush1.msra.mxu0 0.0
    %288 = vmatprep.subr.mxu0 0.0
    %289 = vmatpush1.msra.mxu0 0.0
    %290 = vmatprep.subr.mxu0 0.0
    %291 = vmatpush1.msra.mxu0 0.0
    %292 = vmatprep.subr.mxu0 0.0
    %293 = vmatpush1.msra.mxu0 0.0
    %294 = vmatprep.subr.mxu0 0.0
    %295 = vmatpush1.msra.mxu0 0.0
    %296 = vmatprep.subr.mxu0 0.0
    %297 = vmatpush1.msra.mxu0 0.0
    %298 = vmatprep.subr.mxu0 0.0
    %299 = vmatpush1.msra.mxu0 0.0
    %300 = vmatprep.subr.mxu0 0.0
    %301 = vmatpush1.msra.mxu0 0.0
    %302 = vmatprep.subr.mxu0 0.0
    %303 = vmatpush1.msra.mxu0 %v219
    %304 = vmatprep.subr.mxu0 0.0
    %305 = vmatpush1.msra.mxu0 %v217
    %306 = vmatprep.subr.mxu0 0.0
    %307 = vmatpush2.msra.mxu0 0.0
    %308 = vmatprep.subr.mxu0 0.0
    %309 = vmatpush2.msra.mxu0 0.0
    %310 = vmatprep.subr.mxu0 0.0
    %311 = vmatpush2.msra.mxu0 0.0
    %312 = vmatprep.subr.mxu0 0.0
    %313 = vmatpush2.msra.mxu0 0.0
    %314 = vmatprep.subr.mxu0 0.0
    %315 = vmatpush2.msra.mxu0 0.0
    %316 = vmatprep.subr.mxu0 0.0
    %317 = vmatpush2.msra.mxu0 0.0
    %318 = vmatprep.subr.mxu0 0.0
    %319 = vmatpush2.msra.mxu0 0.0
    %320 = vmatprep.subr.mxu0 0.0
    %321 = vmatpush2.msra.mxu0 0.0
    %322 = vmatprep.subr.mxu0 0.0
    %323 = vmatpush2.msra.mxu0 0.0
    %324 = vmatprep.subr.mxu0 0.0
    %325 = vmatpush2.msra.mxu0 0.0
    %326 = vmatprep.subr.mxu0 0.0
    %327 = vmatpush2.msra.mxu0 0.0
    %328 = vmatprep.subr.mxu0 0.0
    %329 = vmatpush2.msra.mxu0 0.0
    %330 = vmatprep.subr.mxu0 0.0
    %331 = vmatpush2.msra.mxu0 0.0
    %332 = vmatprep.subr.mxu0 0.0
    %333 = vmatpush2.msra.mxu0 0.0
    %334 = vmatprep.subr.mxu0 0.0
    %335 = vmatpush2.msra.mxu0 0.0
    %336 = vmatprep.subr.mxu0 0.0
    %337 = vmatpush2.msra.mxu0 0.0
    %338 = vmatprep.mubr.f32.mxu0 0.0
    %339 = vmatmul.mubr.f32.gmra.mxu0 %v272
    %v340 = vpop.f32.mrf.mxu0
    %v341 = vadd.f32 0.0, %v340
    %v342 = vpop.f32.mrf.mxu0
    %343 = vdwg.mxu0
    %vm344 = vcmask 15360
    %v346 = vsel %vm344, %v268, 0
    %v349 = vsel %vm344, %v269, 0
    %vm351 = vcmask 1041408
    %v353 = vsel %vm351, %v341, 0
    %355 = vmatprep.subr.mxu0 0.0
    %356 = vmatpush1.msra.mxu0 0.0
    %357 = vmatprep.subr.mxu0 0.0
    %358 = vmatpush1.msra.mxu0 0.0
    %359 = vmatprep.subr.mxu0 0.0
    %360 = vmatpush1.msra.mxu0 0.0
    %361 = vmatprep.subr.mxu0 0.0
    %362 = vmatpush1.msra.mxu0 0.0
    %363 = vmatprep.subr.mxu0 0.0
    %364 = vmatpush1.msra.mxu0 0.0
    %365 = vmatprep.subr.mxu0 0.0
    %366 = vmatpush1.msra.mxu0 0.0
    %367 = vmatprep.subr.mxu0 0.0
    %368 = vmatpush1.msra.mxu0 0.0
    %369 = vmatprep.subr.mxu0 0.0
    %370 = vmatpush1.msra.mxu0 0.0
    %371 = vmatprep.subr.mxu0 0.0
    %372 = vmatpush1.msra.mxu0 0.0
    %373 = vmatprep.subr.mxu0 0.0
    %374 = vmatpush1.msra.mxu0 0.0
    %375 = vmatprep.subr.mxu0 0.0
    %376 = vmatpush1.msra.mxu0 0.0
    %377 = vmatprep.subr.mxu0 0.0
    %378 = vmatpush1.msra.mxu0 0.0
    %379 = vmatprep.subr.mxu0 0.0
    %380 = vmatpush1.msra.mxu0 0.0
    %381 = vmatprep.subr.mxu0 0.0
    %382 = vmatpush1.msra.mxu0 0.0
    %383 = vmatprep.subr.mxu0 0.0
    %384 = vmatpush1.msra.mxu0 0.0
    %385 = vmatprep.subr.mxu0 0.0
    %386 = vmatpush1.msra.mxu0 %v353
    %387 = vmatprep.subr.mxu0 0.0
    %388 = vmatpush2.msra.mxu0 0.0
    %389 = vmatprep.subr.mxu0 0.0
    %390 = vmatpush2.msra.mxu0 0.0
    %391 = vmatprep.subr.mxu0 0.0
    %392 = vmatpush2.msra.mxu0 0.0
    %393 = vmatprep.subr.mxu0 0.0
    %394 = vmatpush2.msra.mxu0 0.0
    %395 = vmatprep.subr.mxu0 0.0
    %396 = vmatpush2.msra.mxu0 0.0
    %397 = vmatprep.subr.mxu0 0.0
    %398 = vmatpush2.msra.mxu0 0.0
    %399 = vmatprep.subr.mxu0 0.0
    %400 = vmatpush2.msra.mxu0 0.0
    %401 = vmatprep.subr.mxu0 0.0
    %402 = vmatpush2.msra.mxu0 0.0
    %403 = vmatprep.subr.mxu0 0.0
    %404 = vmatpush2.msra.mxu0 0.0
    %405 = vmatprep.subr.mxu0 0.0
    %406 = vmatpush2.msra.mxu0 0.0
    %407 = vmatprep.subr.mxu0 0.0
    %408 = vmatpush2.msra.mxu0 0.0
    %409 = vmatprep.subr.mxu0 0.0
    %410 = vmatpush2.msra.mxu0 0.0
    %411 = vmatprep.subr.mxu0 0.0
    %412 = vmatpush2.msra.mxu0 0.0
    %413 = vmatprep.subr.mxu0 0.0
    %414 = vmatpush2.msra.mxu0 0.0
    %415 = vmatprep.subr.mxu0 0.0
    %416 = vmatpush2.msra.mxu0 0.0
    %417 = vmatprep.subr.mxu0 0.0
    %418 = vmatpush2.msra.mxu0 0.0
    %419 = vmatprep.mubr.f32.mxu0 0.0
    %420 = vmatmul.mubr.f32.gmra.mxu0 %v346
    %v421 = vpop.f32.mrf.mxu0
    %v422 = vadd.f32 0.0, %v421
    %v423 = vpop.f32.mrf.mxu0
    %424 = vmatprep.mubr.f32.mxu0 0.0
    %425 = vmatmul.mubr.f32.gmra.mxu0 %v349
    %v426 = vpop.f32.mrf.mxu0
    %v427 = vadd.f32 0.0, %v426
    %v428 = vpop.f32.mrf.mxu0
    %429 = vdwg.mxu0
    %v430 = vrcp.pop %v422
    %v431 = vmul.f32 %v217, %v430
    %v432 = vrcp.pop %v427
    %v433 = vmul.f32 %v219, %v432
    %v434 = vld [vmem:[%s3] sm:$0xff]
    %v435 = vld [vmem:[%s3 + $0x8] sm:$0xff]
    %v436 = vld [vmem:[%s3 + $0x10] sm:$0xff]
    %v437 = vld [vmem:[%s3 + $0x18] sm:$0xff]
    %s438 = scalar_lea.vmem %s3, 32
    %v439 = vld [vmem:[%s438] sm:$0xff]
    %v440 = vld [vmem:[%s438 + $0x8] sm:$0xff]
    %v441 = vld [vmem:[%s438 + $0x10] sm:$0xff]
    %v442 = vld [vmem:[%s438 + $0x18] sm:$0xff]
    %v444 = vsel %vm41, %v30, 0
    %v447 = vsel %vm41, %v31, 0
    %449 = vmatprep.subr.mxu0 0.0
    %450 = vmatpush1.msra.mxu0 0.0
    %451 = vmatprep.subr.mxu0 0.0
    %452 = vmatpush1.msra.mxu0 0.0
    %453 = vmatprep.subr.mxu0 0.0
    %454 = vmatpush1.msra.mxu0 0.0
    %455 = vmatprep.subr.mxu0 0.0
    %456 = vmatpush1.msra.mxu0 0.0
    %457 = vmatprep.subr.mxu0 0.0
    %458 = vmatpush1.msra.mxu0 0.0
    %459 = vmatprep.subr.mxu0 0.0
    %460 = vmatpush1.msra.mxu0 0.0
    %461 = vmatprep.subr.mxu0 0.0
    %462 = vmatpush1.msra.mxu0 0.0
    %463 = vmatprep.subr.mxu0 0.0
    %464 = vmatpush1.msra.mxu0 0.0
    %465 = vmatprep.subr.mxu0 0.0
    %466 = vmatpush1.msra.mxu0 0.0
    %467 = vmatprep.subr.mxu0 0.0
    %468 = vmatpush1.msra.mxu0 0.0
    %469 = vmatprep.subr.mxu0 0.0
    %470 = vmatpush1.msra.mxu0 0.0
    %471 = vmatprep.subr.mxu0 0.0
    %472 = vmatpush1.msra.mxu0 0.0
    %473 = vmatprep.subr.mxu0 0.0
    %474 = vmatpush1.msra.mxu0 %v442
    %475 = vmatprep.subr.mxu0 0.0
    %476 = vmatpush1.msra.mxu0 %v441
    %477 = vmatprep.subr.mxu0 0.0
    %478 = vmatpush1.msra.mxu0 %v440
    %479 = vmatprep.subr.mxu0 0.0
    %480 = vmatpush1.msra.mxu0 %v439
    %481 = vmatprep.subr.mxu0 0.0
    %482 = vmatpush2.msra.mxu0 0.0
    %483 = vmatprep.subr.mxu0 0.0
    %484 = vmatpush2.msra.mxu0 0.0
    %485 = vmatprep.subr.mxu0 0.0
    %486 = vmatpush2.msra.mxu0 0.0
    %487 = vmatprep.subr.mxu0 0.0
    %488 = vmatpush2.msra.mxu0 0.0
    %489 = vmatprep.subr.mxu0 0.0
    %490 = vmatpush2.msra.mxu0 0.0
    %491 = vmatprep.subr.mxu0 0.0
    %492 = vmatpush2.msra.mxu0 0.0
    %493 = vmatprep.subr.mxu0 0.0
    %494 = vmatpush2.msra.mxu0 0.0
    %495 = vmatprep.subr.mxu0 0.0
    %496 = vmatpush2.msra.mxu0 0.0
    %497 = vmatprep.subr.mxu0 0.0
    %498 = vmatpush2.msra.mxu0 0.0
    %499 = vmatprep.subr.mxu0 0.0
    %500 = vmatpush2.msra.mxu0 0.0
    %501 = vmatprep.subr.mxu0 0.0
    %502 = vmatpush2.msra.mxu0 0.0
    %503 = vmatprep.subr.mxu0 0.0
    %504 = vmatpush2.msra.mxu0 0.0
    %505 = vmatprep.subr.mxu0 0.0
    %506 = vmatpush2.msra.mxu0 0.0
    %507 = vmatprep.subr.mxu0 0.0
    %508 = vmatpush2.msra.mxu0 0.0
    %509 = vmatprep.subr.mxu0 0.0
    %510 = vmatpush2.msra.mxu0 0.0
    %511 = vmatprep.subr.mxu0 0.0
    %512 = vmatpush2.msra.mxu0 0.0
    %513 = vmatprep.mubr.f32.mxu0 0.0
    %514 = vmatmul.mubr.f32.gmra.mxu0 %v444
    %v515 = vpop.f32.mrf.mxu0
    %v516 = vadd.f32 0.0, %v515
    %v517 = vpop.f32.mrf.mxu0
    %518 = vmatprep.mubr.f32.mxu0 0.0
    %519 = vmatmul.mubr.f32.gmra.mxu0 %v447
    %v520 = vpop.f32.mrf.mxu0
    %v521 = vadd.f32 0.0, %v520
    %v522 = vpop.f32.mrf.mxu0
    %523 = vdwg.mxu0
    %v525 = vsel %vm41, %v27, 0
    %v528 = vsel %vm41, %v28, 0
    %530 = vmatprep.subr.mxu0 0.0
    %531 = vmatpush1.msra.mxu0 0.0
    %532 = vmatprep.subr.mxu0 0.0
    %533 = vmatpush1.msra.mxu0 0.0
    %534 = vmatprep.subr.mxu0 0.0
    %535 = vmatpush1.msra.mxu0 0.0
    %536 = vmatprep.subr.mxu0 0.0
    %537 = vmatpush1.msra.mxu0 0.0
    %538 = vmatprep.subr.mxu0 0.0
    %539 = vmatpush1.msra.mxu0 0.0
    %540 = vmatprep.subr.mxu0 0.0
    %541 = vmatpush1.msra.mxu0 0.0
    %542 = vmatprep.subr.mxu0 0.0
    %543 = vmatpush1.msra.mxu0 0.0
    %544 = vmatprep.subr.mxu0 0.0
    %545 = vmatpush1.msra.mxu0 0.0
    %546 = vmatprep.subr.mxu0 0.0
    %547 = vmatpush1.msra.mxu0 0.0
    %548 = vmatprep.subr.mxu0 0.0
    %549 = vmatpush1.msra.mxu0 0.0
    %550 = vmatprep.subr.mxu0 0.0
    %551 = vmatpush1.msra.mxu0 0.0
    %552 = vmatprep.subr.mxu0 0.0
    %553 = vmatpush1.msra.mxu0 0.0
    %554 = vmatprep.subr.mxu0 0.0
    %555 = vmatpush1.msra.mxu0 %v437
    %556 = vmatprep.subr.mxu0 0.0
    %557 = vmatpush1.msra.mxu0 %v436
    %558 = vmatprep.subr.mxu0 0.0
    %559 = vmatpush1.msra.mxu0 %v435
    %560 = vmatprep.subr.mxu0 0.0
    %561 = vmatpush1.msra.mxu0 %v434
    %562 = vmatprep.subr.mxu0 0.0
    %563 = vmatpush2.msra.mxu0 0.0
    %564 = vmatprep.subr.mxu0 0.0
    %565 = vmatpush2.msra.mxu0 0.0
    %566 = vmatprep.subr.mxu0 0.0
    %567 = vmatpush2.msra.mxu0 0.0
    %568 = vmatprep.subr.mxu0 0.0
    %569 = vmatpush2.msra.mxu0 0.0
    %570 = vmatprep.subr.mxu0 0.0
    %571 = vmatpush2.msra.mxu0 0.0
    %572 = vmatprep.subr.mxu0 0.0
    %573 = vmatpush2.msra.mxu0 0.0
    %574 = vmatprep.subr.mxu0 0.0
    %575 = vmatpush2.msra.mxu0 0.0
    %576 = vmatprep.subr.mxu0 0.0
    %577 = vmatpush2.msra.mxu0 0.0
    %578 = vmatprep.subr.mxu0 0.0
    %579 = vmatpush2.msra.mxu0 0.0
    %580 = vmatprep.subr.mxu0 0.0
    %581 = vmatpush2.msra.mxu0 0.0
    %582 = vmatprep.subr.mxu0 0.0
    %583 = vmatpush2.msra.mxu0 0.0
    %584 = vmatprep.subr.mxu0 0.0
    %585 = vmatpush2.msra.mxu0 0.0
    %586 = vmatprep.subr.mxu0 0.0
    %587 = vmatpush2.msra.mxu0 0.0
    %588 = vmatprep.subr.mxu0 0.0
    %589 = vmatpush2.msra.mxu0 0.0
    %590 = vmatprep.subr.mxu0 0.0
    %591 = vmatpush2.msra.mxu0 0.0
    %592 = vmatprep.subr.mxu0 0.0
    %593 = vmatpush2.msra.mxu0 0.0
    %594 = vmatprep.mubr.f32.mxu0 0.0
    %595 = vmatmul.mubr.f32.gmra.mxu0 %v525
    %v596 = vpop.f32.mrf.mxu0
    %v597 = vadd.f32 %v516, %v596
    %v598 = vpop.f32.mrf.mxu0
    %599 = vmatprep.mubr.f32.mxu0 0.0
    %600 = vmatmul.mubr.f32.gmra.mxu0 %v528
    %v601 = vpop.f32.mrf.mxu0
    %v602 = vadd.f32 %v521, %v601
    %v603 = vpop.f32.mrf.mxu0
    %604 = vdwg.mxu0
    %v605 = vtanh.pop %v597
    %v606 = vtanh.pop %v602
    %v607 = vld [vmem:[%s1] sm:$0xff]
    %v608 = vld [vmem:[%s1 + $0x8] sm:$0xff]
    %v609 = vmul.f32 %v607, %v605
    %v610 = vmul.f32 %v608, %v606
    %612 = vset.pattern.permute.xlu0 0
    %613 = vperm.xlu0 %612, %v431
    %v614 = vpop.permute.xlu0 %613
    %617 = vset.pattern.permute.xlu0 0
    %618 = vperm.xlu0 %617, %v433
    %v619 = vpop.permute.xlu0 %618
    %v621 = vmul.f32 %v609, %v614
    %v622 = vmul.f32 %v610, %v619
    %623 = vmatprep.subr.mxu0 0.0
    %624 = vmatpush1.msra.mxu0 0.0
    %625 = vmatprep.subr.mxu0 0.0
    %626 = vmatpush1.msra.mxu0 0.0
    %627 = vmatprep.subr.mxu0 0.0
    %628 = vmatpush1.msra.mxu0 0.0
    %629 = vmatprep.subr.mxu0 0.0
    %630 = vmatpush1.msra.mxu0 0.0
    %631 = vmatprep.subr.mxu0 0.0
    %632 = vmatpush1.msra.mxu0 0.0
    %633 = vmatprep.subr.mxu0 0.0
    %634 = vmatpush1.msra.mxu0 0.0
    %635 = vmatprep.subr.mxu0 0.0
    %636 = vmatpush1.msra.mxu0 0.0
    %637 = vmatprep.subr.mxu0 0.0
    %638 = vmatpush1.msra.mxu0 0.0
    %639 = vmatprep.subr.mxu0 0.0
    %640 = vmatpush1.msra.mxu0 0.0
    %641 = vmatprep.subr.mxu0 0.0
    %642 = vmatpush1.msra.mxu0 0.0
    %643 = vmatprep.subr.mxu0 0.0
    %644 = vmatpush1.msra.mxu0 0.0
    %645 = vmatprep.subr.mxu0 0.0
    %646 = vmatpush1.msra.mxu0 0.0
    %647 = vmatprep.subr.mxu0 0.0
    %648 = vmatpush1.msra.mxu0 0.0
    %649 = vmatprep.subr.mxu0 0.0
    %650 = vmatpush1.msra.mxu0 0.0
    %651 = vmatprep.subr.mxu0 0.0
    %652 = vmatpush1.msra.mxu0 %v622
    %653 = vmatprep.subr.mxu0 0.0
    %654 = vmatpush1.msra.mxu0 %v621
    %655 = vmatprep.subr.mxu0 0.0
    %656 = vmatpush2.msra.mxu0 0.0
    %657 = vmatprep.subr.mxu0 0.0
    %658 = vmatpush2.msra.mxu0 0.0
    %659 = vmatprep.subr.mxu0 0.0
    %660 = vmatpush2.msra.mxu0 0.0
    %661 = vmatprep.subr.mxu0 0.0
    %662 = vmatpush2.msra.mxu0 0.0
    %663 = vmatprep.subr.mxu0 0.0
    %664 = vmatpush2.msra.mxu0 0.0
    %665 = vmatprep.subr.mxu0 0.0
    %666 = vmatpush2.msra.mxu0 0.0
    %667 = vmatprep.subr.mxu0 0.0
    %668 = vmatpush2.msra.mxu0 0.0
    %669 = vmatprep.subr.mxu0 0.0
    %670 = vmatpush2.msra.mxu0 0.0
    %671 = vmatprep.subr.mxu0 0.0
    %672 = vmatpush2.msra.mxu0 0.0
    %673 = vmatprep.subr.mxu0 0.0
    %674 = vmatpush2.msra.mxu0 0.0
    %675 = vmatprep.subr.mxu0 0.0
    %676 = vmatpush2.msra.mxu0 0.0
    %677 = vmatprep.subr.mxu0 0.0
    %678 = vmatpush2.msra.mxu0 0.0
    %679 = vmatprep.subr.mxu0 0.0
    %680 = vmatpush2.msra.mxu0 0.0
    %681 = vmatprep.subr.mxu0 0.0
    %682 = vmatpush2.msra.mxu0 0.0
    %683 = vmatprep.subr.mxu0 0.0
    %684 = vmatpush2.msra.mxu0 0.0
    %685 = vmatprep.subr.mxu0 0.0
    %686 = vmatpush2.msra.mxu0 0.0
    %687 = vmatprep.mubr.f32.mxu0 0.0
    %688 = vmatmul.mubr.f32.gmra.mxu0 %v272
    %v689 = vpop.f32.mrf.mxu0
    %v690 = vadd.f32 0.0, %v689
    %v691 = vpop.f32.mrf.mxu0
    %692 = vdwg.mxu0
    %v693 = vld [vmem:[%s4] sm:$0xff]
    %v694 = vld [vmem:[%s4 + $0x8] sm:$0xff]
    %v695 = vld [vmem:[%s4 + $0x10] sm:$0xff]
    %v696 = vld [vmem:[%s4 + $0x18] sm:$0xff]
    %v698 = vsel %vm41, %v690, 0
    %700 = vmatprep.subr.mxu0 0.0
    %701 = vmatpush1.msra.mxu0 0.0
    %702 = vmatprep.subr.mxu0 0.0
    %703 = vmatpush1.msra.mxu0 0.0
    %704 = vmatprep.subr.mxu0 0.0
    %705 = vmatpush1.msra.mxu0 0.0
    %706 = vmatprep.subr.mxu0 0.0
    %707 = vmatpush1.msra.mxu0 0.0
    %708 = vmatprep.subr.mxu0 0.0
    %709 = vmatpush1.msra.mxu0 0.0
    %710 = vmatprep.subr.mxu0 0.0
    %711 = vmatpush1.msra.mxu0 0.0
    %712 = vmatprep.subr.mxu0 0.0
    %713 = vmatpush1.msra.mxu0 0.0
    %714 = vmatprep.subr.mxu0 0.0
    %715 = vmatpush1.msra.mxu0 0.0
    %716 = vmatprep.subr.mxu0 0.0
    %717 = vmatpush1.msra.mxu0 0.0
    %718 = vmatprep.subr.mxu0 0.0
    %719 = vmatpush1.msra.mxu0 0.0
    %720 = vmatprep.subr.mxu0 0.0
    %721 = vmatpush1.msra.mxu0 0.0
    %722 = vmatprep.subr.mxu0 0.0
    %723 = vmatpush1.msra.mxu0 0.0
    %724 = vmatprep.subr.mxu0 0.0
    %725 = vmatpush1.msra.mxu0 %v696
    %726 = vmatprep.subr.mxu0 0.0
    %727 = vmatpush1.msra.mxu0 %v695
    %728 = vmatprep.subr.mxu0 0.0
    %729 = vmatpush1.msra.mxu0 %v694
    %730 = vmatprep.subr.mxu0 0.0
    %731 = vmatpush1.msra.mxu0 %v693
    %732 = vmatprep.subr.mxu0 0.0
    %733 = vmatpush2.msra.mxu0 0.0
    %734 = vmatprep.subr.mxu0 0.0
    %735 = vmatpush2.msra.mxu0 0.0
    %736 = vmatprep.subr.mxu0 0.0
    %737 = vmatpush2.msra.mxu0 0.0
    %738 = vmatprep.subr.mxu0 0.0
    %739 = vmatpush2.msra.mxu0 0.0
    %740 = vmatprep.subr.mxu0 0.0
    %741 = vmatpush2.msra.mxu0 0.0
    %742 = vmatprep.subr.mxu0 0.0
    %743 = vmatpush2.msra.mxu0 0.0
    %744 = vmatprep.subr.mxu0 0.0
    %745 = vmatpush2.msra.mxu0 0.0
    %746 = vmatprep.subr.mxu0 0.0
    %747 = vmatpush2.msra.mxu0 0.0
    %748 = vmatprep.subr.mxu0 0.0
    %749 = vmatpush2.msra.mxu0 0.0
    %750 = vmatprep.subr.mxu0 0.0
    %751 = vmatpush2.msra.mxu0 0.0
    %752 = vmatprep.subr.mxu0 0.0
    %753 = vmatpush2.msra.mxu0 0.0
    %754 = vmatprep.subr.mxu0 0.0
    %755 = vmatpush2.msra.mxu0 0.0
    %756 = vmatprep.subr.mxu0 0.0
    %757 = vmatpush2.msra.mxu0 0.0
    %758 = vmatprep.subr.mxu0 0.0
    %759 = vmatpush2.msra.mxu0 0.0
    %760 = vmatprep.subr.mxu0 0.0
    %761 = vmatpush2.msra.mxu0 0.0
    %762 = vmatprep.subr.mxu0 0.0
    %763 = vmatpush2.msra.mxu0 0.0
    %764 = vmatprep.mubr.f32.mxu0 0.0
    %765 = vmatmul.mubr.f32.gmra.mxu0 %v698
    %v766 = vpop.f32.mrf.mxu0
    %v767 = vadd.f32 0.0, %v766
    %v768 = vpop.f32.mrf.mxu0
    %769 = vdwg.mxu0
    %vm770 = vcmask 33792
    %771 = vst.msk [vmem:[#allocation2] sm:$0x3] %vm770, %v767
    // Predicated region
    $region22: #{retain_ex_forward.7} parent=1 // pred_check
      _
    $region23: #{retain_ex_forward.7} parent=1 // pred_check_branch
      %773 = sbr.rel (0) target = $region25
    $region24: #{retain_ex_forward.7} parent=1 // pred_region
      %s775 = ssub.s32 32, 32
      %776 = vsyncadd [#allocation3], %s775
      %s778 = sshll.u32 [#allocation2], 4
      %s779 = int_to_ptr.vmem [resolvable:$true] %s778
      %781 = dma.vmem_to_hbm [thread:$0]  %s779, 32, %s5, [#allocation3]
    $region25: #{retain_ex_forward.7} parent=1 // pred_fallthru
      _
    // Predicated region
    $region26: #{retain_ex_forward.7} parent=1 // pred_check
      _
    $region27: #{retain_ex_forward.7} parent=1 // pred_check_branch
      %783 = sbr.rel (0) target = $region29
    $region28: #{retain_ex_forward.7} parent=1 // pred_region
      %784 = dma.done [#allocation3], 32
    $region29: #{retain_ex_forward.7} parent=1 // pred_fallthru
      _
    %785 = vsyncpa [#allocation3], 1

</llo_original>
